<compile_context>
chip_gen: v7x
topology: tpu7x:2x2x1
jax: 0.10.0
libtpu: 0.0.40
codegen_flags: <defaults>
</compile_context>

<pallas_src>
from functools import partial

import jax
import jax.numpy as jnp
from jax import lax
from jax.experimental import pallas as pl
from jax.experimental.pallas import tpu as pltpu

HIDDEN = 32


def _mlp_kernel(x_ref, w_ref, v_ref, o_ref, *, act_dtype, precision):
    """relu chain of 4 Linear layers with batch on the lane axis.

    x_ref: (2, tb) f32              batch on lanes
    w_ref: (64, 32) compute dtype   rows 0:32 = W2, rows 32:64 = W3 (out, in)
    v_ref: (32, 8)  f32 columns:    [w1[:,0], w1[:,1], w4, b1, b2, b3, b4@row0, 0]
    o_ref: (1, tb) f32              lane-dense output
    """
    cdt = w_ref.dtype                    # MXU operand dtype (weights' dtype)
    adt = act_dtype                      # dtype for the bias-add / ReLU vregs

    x0 = x_ref[0:1, :]                   # (1, tb) f32
    x1 = x_ref[1:2, :]

    v = v_ref[...]                       # (32, 8) f32, tiny & resident
    w1c0, w1c1 = v[:, 0:1], v[:, 1:2]    # (32, 1)
    w4c = v[:, 2:3]                      # (32, 1)
    b1, b2, b3 = v[:, 3:4], v[:, 4:5], v[:, 5:6]
    b4 = v[0:1, 6:7]                     # (1, 1)

    # ---- layer 1 on the VPU: K=2 degenerate contraction, exact f32 ----
    h = jnp.maximum(w1c0 * x0 + w1c1 * x1 + b1, 0.0)          # (32, tb) f32

    # ---- layers 2 & 3 on the MXU: (32,32) @ (32,tb), f32 accumulation ----
    a = h.astype(cdt)
    acc = jnp.dot(w_ref[0:HIDDEN, :], a,
                  preferred_element_type=jnp.float32, precision=precision)
    a = jnp.maximum(acc.astype(adt) + b2.astype(adt), 0).astype(cdt)
    acc = jnp.dot(w_ref[HIDDEN:2 * HIDDEN, :], a,
                  preferred_element_type=jnp.float32, precision=precision)
    h = jnp.maximum(acc + b3, 0.0)                            # (32, tb) f32

    # ---- layer 4 (M=1) off the MXU: VPU mul + sublane (XLU) reduction ----
    out = jnp.sum(h * w4c, axis=0, keepdims=True) + b4        # (1, tb) f32
    o_ref[...] = out.astype(o_ref.dtype)                      # unmasked vst


def _has_two_tensorcores():
    """Heuristic: chips whose Pallas 'parallel' grid axis is split over 2 TCs."""
    try:
        kind = jax.devices()[0].device_kind.lower()
    except Exception:
        return False
    return any(tag in kind for tag in ("7", "v4", "v5p"))


def _choose_tb(batch, *, max_tb=2048, prefer_even_grid=False):
    """Lane-axis tile (multiple of 128).

    1-TC chips: one big tile covering the whole batch up to max_tb (the
    ~0.35us per-grid-step overhead dwarfs the tiny x/out DMA).
    2-TC chips: an even number of grid steps so both TensorCores get work.
    max_tb is a sweep parameter (1024 / 2048 / 4096 are all VMEM-safe).
    """
    lanes = pl.cdiv(batch, 128) * 128
    steps = pl.cdiv(lanes, max_tb)
    if prefer_even_grid and lanes > 128:
        steps = max(2, steps + (steps % 2))
    if steps <= 1:
        return lanes
    tb = pl.cdiv(pl.cdiv(lanes, steps), 128) * 128
    if prefer_even_grid:
        while (pl.cdiv(lanes, tb) % 2 != 0) and tb < lanes:
            tb += 128
    return tb


def pack_params(params, compute_dtype=jnp.float32):
    """Pack the 8 Linear tensors into 2 slabs (2 prologue DMAs instead of 9).

    wslab (64, 32) compute_dtype : rows 0:32 = W2, rows 32:64 = W3 (out, in).
    vslab (32, 8)  float32 cols  : [w1[:,0], w1[:,1], w4, b1, b2, b3, b4@row0, 0].
    W1/W4 and all biases stay f32 (they feed VPU math / f32 accumulators).
    """
    f32 = jnp.float32
    w1 = params["w1"].astype(f32)                        # (32, 2)
    w4 = params["w4"].astype(f32).reshape(HIDDEN)        # (32,)
    wslab = jnp.concatenate([params["w2"].astype(compute_dtype),
                             params["w3"].astype(compute_dtype)], axis=0)
    b4col = jnp.zeros((HIDDEN,), f32).at[0].set(params["b4"].astype(f32).reshape(()))
    vslab = jnp.stack(
        [w1[:, 0], w1[:, 1], w4,
         params["b1"].astype(f32).reshape(HIDDEN),
         params["b2"].astype(f32).reshape(HIDDEN),
         params["b3"].astype(f32).reshape(HIDDEN),
         b4col,
         jnp.zeros((HIDDEN,), f32)], axis=1)             # (32, 8)
    return wslab, vslab


def vpnet_forward_t(x_t, packed, *, tb=None, act_dtype=None, precision=None,
                    prefer_even_grid=None, max_tb=2048):
    """Fast path: x_t is feature-major (2, B) f32 (no wrapper transpose/pad).

    Returns (B, 1) f32 (the (1,B)->(B,1) reshape is free)."""
    wslab, vslab = packed
    F, B = x_t.shape
    assert F == 2, "expected feature-major input of shape (2, batch)"
    x_t = x_t.astype(jnp.float32)

    if prefer_even_grid is None:
        prefer_even_grid = _has_two_tensorcores()
    if tb is None:
        tb = _choose_tb(B, max_tb=max_tb, prefer_even_grid=prefer_even_grid)
    assert tb % 128 == 0, "batch tile must be lane-aligned (multiple of 128)"
    grid_b = pl.cdiv(B, tb)   # ragged tail handled by Pallas block masking

    if act_dtype is None:
        # bf16 activations when weights are bf16 (v6e/v7x); pass jnp.float32
        # explicitly on v5e (no bf16 VPU there).
        act_dtype = wslab.dtype

    flops = 2 * B * (2 * HIDDEN + 2 * HIDDEN * HIDDEN + HIDDEN)
    bytes_accessed = (x_t.size * x_t.dtype.itemsize + B * 4
                      + wslab.size * wslab.dtype.itemsize
                      + vslab.size * vslab.dtype.itemsize)

    out = pl.pallas_call(
        partial(_mlp_kernel, act_dtype=act_dtype, precision=precision),
        out_shape=jax.ShapeDtypeStruct((1, B), jnp.float32),
        grid_spec=pl.GridSpec(
            grid=(grid_b,),
            in_specs=[
                pl.BlockSpec((2, tb), lambda i: (0, i)),        # x tile (batch on lanes)
                pl.BlockSpec(wslab.shape, lambda i: (0, 0)),    # resident weight slab
                pl.BlockSpec(vslab.shape, lambda i: (0, 0)),    # resident vector slab
            ],
            out_specs=pl.BlockSpec((1, tb), lambda i: (0, i)),  # lane-dense output tile
        ),
        compiler_params=pltpu.CompilerParams(
            dimension_semantics=("parallel",)),                 # megacore-shardable
        cost_estimate=pl.CostEstimate(
            flops=flops, transcendentals=0, bytes_accessed=bytes_accessed),
    )(x_t, wslab, vslab)

    return out.reshape(B, 1)


def vpnet_forward(x, packed, **kwargs):
    """PyTorch-layout convenience wrapper: x is (B, 2) f32, returns (B, 1).

    Note: this does one x.T HBM pass; callers that can supply feature-major
    (2, B) input should use vpnet_forward_t directly."""
    return vpnet_forward_t(x.T, packed, **kwargs)


def init_params(key):
    """PyTorch nn.Linear default init: W, b ~ U(-1/sqrt(fan_in), 1/sqrt(fan_in)).
    PyTorch shapes: W (out, in), b (out,). All float32."""
    dims = [(2, 32), (32, 32), (32, 32), (32, 1)]
    params = {}
    for idx, (fan_in, fan_out) in enumerate(dims, start=1):
        key, kw, kb = jax.random.split(key, 3)
        bound = 1.0 / (float(fan_in) ** 0.5)
        params[f"w{idx}"] = jax.random.uniform(kw, (fan_out, fan_in),
                                               jnp.float32, -bound, bound)
        params[f"b{idx}"] = jax.random.uniform(kb, (fan_out,),
                                               jnp.float32, -bound, bound)
    return params


def vpnet_reference(x, params):
    """Pure-JAX f32 reference matching the PyTorch module."""
    h = x.astype(jnp.float32)
    for i in (1, 2, 3):
        w = params[f"w{i}"].astype(jnp.float32)
        b = params[f"b{i}"].astype(jnp.float32)
        h = jnp.maximum(h @ w.T + b, 0.0)
    return h @ params["w4"].astype(jnp.float32).T + params["b4"].astype(jnp.float32)


if __name__ == "__main__":
    key = jax.random.PRNGKey(0)
    key, kx = jax.random.split(key)
    batch = 256
    x = jax.random.normal(kx, (batch, 2), dtype=jnp.float32)

    params = init_params(key)
    ref = vpnet_reference(x, params)

    # (1) PyTorch-parity config: f32 weights + HIGHEST matmuls (opt-in only).
    packed_f32 = pack_params(params, jnp.float32)
    out = jax.block_until_ready(
        vpnet_forward(x, packed_f32, precision=lax.Precision.HIGHEST))
    assert out.shape == (batch, 1)
    assert jnp.allclose(out, ref, atol=1e-5, rtol=1e-5)

    # (2) Default config: f32 weights, DEFAULT matmul precision (no 3-6x
    #     HIGHEST emulation on v5e).
    out = jax.block_until_ready(vpnet_forward(x, packed_f32))
    assert jnp.allclose(out, ref, atol=5e-2, rtol=5e-2)

    # (3) Recommended MXU config: bf16 weights + bf16 activations, f32 accum.
    packed_bf16 = pack_params(params, jnp.bfloat16)
    out = jax.block_until_ready(vpnet_forward(x, packed_bf16))
    assert jnp.allclose(out, ref, atol=5e-2, rtol=5e-2)

    # (4) Ragged batch: tail masked in-kernel (no wrapper pad / output slice).
    key, kx2 = jax.random.split(key)
    x2 = jax.random.normal(kx2, (200, 2), dtype=jnp.float32)
    out2 = jax.block_until_ready(
        vpnet_forward(x2, packed_f32, precision=lax.Precision.HIGHEST))
    assert out2.shape == (200, 1)
    assert jnp.allclose(out2, vpnet_reference(x2, params), atol=1e-5, rtol=1e-5)

    # (5) Feature-major fast path (caller supplies (2, B); no input transpose).
    out3 = jax.block_until_ready(vpnet_forward_t(x.T, packed_bf16))
    assert jnp.allclose(out3, ref, atol=5e-2, rtol=5e-2)

    print("KERNEL_OK")
</pallas_src>

<mosaic_0001>
module attributes {stable_mosaic.version = 11 : i64} {
  func.func @_mlp_kernel(%arg0: i32, %arg1: memref<2x256xf32, #tpu.memory_space<vmem>>, %arg2: memref<64x32xf32, #tpu.memory_space<vmem>>, %arg3: memref<32x8xf32, #tpu.memory_space<vmem>>, %arg4: memref<1x256xf32, #tpu.memory_space<vmem>>) attributes {dimension_semantics = [#tpu.dimension_semantics<parallel>], iteration_bounds = array<i64: 1>, scalar_prefetch = 0 : i64, scratch_operands = 0 : i64, tpu.core_type = #tpu.core_type<tc>, window_params = [{transform_indices = @transform_0, window_bounds = array<i64: 2, 256>}, {pipeline_mode = #tpu.pipeline_mode<synchronous>, transform_indices = @transform_1, window_bounds = array<i64: 64, 32>}, {pipeline_mode = #tpu.pipeline_mode<synchronous>, transform_indices = @transform_2, window_bounds = array<i64: 32, 8>}, {transform_indices = @transform_3, window_bounds = array<i64: 1, 256>}]} {
    %c0 = arith.constant 0 : index
    %c0_0 = arith.constant 0 : index
    %0 = vector.load %arg1[%c0, %c0_0] : memref<2x256xf32, #tpu.memory_space<vmem>>, vector<1x256xf32>
    %c1 = arith.constant 1 : index
    %c0_1 = arith.constant 0 : index
    %1 = vector.load %arg1[%c1, %c0_1] : memref<2x256xf32, #tpu.memory_space<vmem>>, vector<1x256xf32>
    %c0_2 = arith.constant 0 : index
    %c0_3 = arith.constant 0 : index
    %2 = vector.load %arg3[%c0_2, %c0_3] : memref<32x8xf32, #tpu.memory_space<vmem>>, vector<32x8xf32>
    %3 = vector.extract_strided_slice %2 {offsets = [0, 0], sizes = [32, 1], strides = [1, 1]} : vector<32x8xf32> to vector<32x1xf32>
    %4 = vector.extract_strided_slice %2 {offsets = [0, 1], sizes = [32, 1], strides = [1, 1]} : vector<32x8xf32> to vector<32x1xf32>
    %5 = vector.extract_strided_slice %2 {offsets = [0, 2], sizes = [32, 1], strides = [1, 1]} : vector<32x8xf32> to vector<32x1xf32>
    %6 = vector.extract_strided_slice %2 {offsets = [0, 3], sizes = [32, 1], strides = [1, 1]} : vector<32x8xf32> to vector<32x1xf32>
    %7 = vector.extract_strided_slice %2 {offsets = [0, 4], sizes = [32, 1], strides = [1, 1]} : vector<32x8xf32> to vector<32x1xf32>
    %8 = vector.extract_strided_slice %2 {offsets = [0, 5], sizes = [32, 1], strides = [1, 1]} : vector<32x8xf32> to vector<32x1xf32>
    %9 = vector.extract_strided_slice %2 {offsets = [0, 6], sizes = [1, 1], strides = [1, 1]} : vector<32x8xf32> to vector<1x1xf32>
    %10 = vector.broadcast %3 : vector<32x1xf32> to vector<32x256xf32>
    %11 = vector.broadcast %0 : vector<1x256xf32> to vector<32x256xf32>
    %12 = arith.mulf %10, %11 : vector<32x256xf32>
    %13 = vector.broadcast %4 : vector<32x1xf32> to vector<32x256xf32>
    %14 = vector.broadcast %1 : vector<1x256xf32> to vector<32x256xf32>
    %15 = arith.mulf %13, %14 : vector<32x256xf32>
    %16 = arith.addf %12, %15 : vector<32x256xf32>
    %17 = vector.broadcast %6 : vector<32x1xf32> to vector<32x256xf32>
    %18 = arith.addf %16, %17 : vector<32x256xf32>
    %cst = arith.constant 0.000000e+00 : f32
    %19 = vector.broadcast %cst : f32 to vector<32x256xf32>
    %20 = arith.maximumf %18, %19 : vector<32x256xf32>
    %c0_4 = arith.constant 0 : index
    %c0_5 = arith.constant 0 : index
    %21 = vector.load %arg2[%c0_4, %c0_5] : memref<64x32xf32, #tpu.memory_space<vmem>>, vector<32x32xf32>
    %cst_6 = arith.constant dense<0.000000e+00> : vector<32x256xf32>
    %22 = tpu.matmul %21, %20, %cst_6 {dimension_numbers = #tpu.dot_dimension_numbers<[1], [0], [0], [1], [0, 0, 1, 1], [], []>, precision = #tpu.contract_precision<fp32>} : vector<32x32xf32>, vector<32x256xf32>, vector<32x256xf32> -> vector<32x256xf32>
    %23 = vector.broadcast %7 : vector<32x1xf32> to vector<32x256xf32>
    %24 = arith.addf %22, %23 : vector<32x256xf32>
    %cst_7 = arith.constant 0.000000e+00 : f32
    %25 = vector.broadcast %cst_7 : f32 to vector<32x256xf32>
    %26 = arith.maximumf %24, %25 : vector<32x256xf32>
    %c32 = arith.constant 32 : index
    %c0_8 = arith.constant 0 : index
    %27 = vector.load %arg2[%c32, %c0_8] : memref<64x32xf32, #tpu.memory_space<vmem>>, vector<32x32xf32>
    %cst_9 = arith.constant dense<0.000000e+00> : vector<32x256xf32>
    %28 = tpu.matmul %27, %26, %cst_9 {dimension_numbers = #tpu.dot_dimension_numbers<[1], [0], [0], [1], [0, 0, 1, 1], [], []>, precision = #tpu.contract_precision<fp32>} : vector<32x32xf32>, vector<32x256xf32>, vector<32x256xf32> -> vector<32x256xf32>
    %29 = vector.broadcast %8 : vector<32x1xf32> to vector<32x256xf32>
    %30 = arith.addf %28, %29 : vector<32x256xf32>
    %cst_10 = arith.constant 0.000000e+00 : f32
    %31 = vector.broadcast %cst_10 : f32 to vector<32x256xf32>
    %32 = arith.maximumf %30, %31 : vector<32x256xf32>
    %33 = vector.broadcast %5 : vector<32x1xf32> to vector<32x256xf32>
    %34 = arith.mulf %32, %33 : vector<32x256xf32>
    %cst_11 = arith.constant dense<0.000000e+00> : vector<256xf32>
    %35 = vector.multi_reduction <add>, %34, %cst_11 [0] : vector<32x256xf32> to vector<256xf32>
    %36 = vector.shape_cast %35 : vector<256xf32> to vector<1x256xf32>
    %37 = vector.broadcast %9 : vector<1x1xf32> to vector<1x256xf32>
    %38 = arith.addf %36, %37 : vector<1x256xf32>
    %c0_12 = arith.constant 0 : index
    %c0_13 = arith.constant 0 : index
    %39 = vector.load %arg4[%c0_12, %c0_13] : memref<1x256xf32, #tpu.memory_space<vmem>>, vector<1x256xf32>
    tpu.vector_store %arg4[%c0_12, %c0_13], %38 {strides = array<i32>} : memref<1x256xf32, #tpu.memory_space<vmem>>, vector<1x256xf32>,
    return
  }
  func.func @transform_0(%arg0: i32) -> (i32, i32) {
    %c0_i32 = arith.constant 0 : i32
    %c0_i32_0 = arith.constant 0 : i32
    return %c0_i32, %arg0 : i32, i32
  }
  func.func @transform_1(%arg0: i32) -> (i32, i32) {
    %c0_i32 = arith.constant 0 : i32
    %c0_i32_0 = arith.constant 0 : i32
    %c0_i32_1 = arith.constant 0 : i32
    return %c0_i32, %c0_i32_0 : i32, i32
  }
  func.func @transform_2(%arg0: i32) -> (i32, i32) {
    %c0_i32 = arith.constant 0 : i32
    %c0_i32_0 = arith.constant 0 : i32
    %c0_i32_1 = arith.constant 0 : i32
    return %c0_i32, %c0_i32_0 : i32, i32
  }
  func.func @transform_3(%arg0: i32) -> (i32, i32) {
    %c0_i32 = arith.constant 0 : i32
    %c0_i32_0 = arith.constant 0 : i32
    return %c0_i32, %arg0 : i32, i32
  }
}

</mosaic_0001>

<llo_original>
// kernel: tpu_custom_call.1
$region0: #{tpu_custom_call.1}
  #allocation0 [shape = 'u32[]', space=smem, size = 0x4, offset = 0x4, fixed_abs, tag = 'smem constant byte address 0x4 - core index']
  #allocation1 [shape = 'u32[144,128]{1,0:T(1,128)}', space=vmem, size = 0x12000, scoped, tag = 'internal scratch']
  %s0 = inlined_call_operand.vmem [shape: f32[2,256], index: 0, kind: input, shape index: {}]
  %s1 = inlined_call_operand.vmem [shape: f32[64,32], index: 1, kind: input, shape index: {}]
  %s2 = inlined_call_operand.vmem [shape: f32[32,8], index: 2, kind: input, shape index: {}]
  %s3 = inlined_call_operand.hbm [shape: f32[1,256], index: 3, kind: output, shape index: {}]
  %s4 = sld [smem:[#allocation0]]
  $region22: #{tpu_custom_call.1} parent=0
    _
  %s6 = ssub.s32 1, %s4
  %s7 = scalar_select 0, %s6, %s4
  $region1: #{tpu_custom_call.1} parent=0
    #allocation2 [shape = 'u8[1024]{0}', space=vmem, size = 0x400, scoped, tag = 'output window, operand 0, single buffered']
    #allocation3 [shape = 's32[1]{0}', space=sflag, size = 0x4, scoped, tag = 'scoped memory for tpu_custom_call.1']
    %8 = vsyncpa [#allocation3], 0
    // Predicated region
    $region2: #{tpu_custom_call.1} parent=1 // pred_check
      _
    $region3: #{tpu_custom_call.1} parent=1 // pred_check_branch
      %10 = sbr.rel (0) target = $region5
    $region4: #{tpu_custom_call.1} parent=1 // pred_region
      _
    $region5: #{tpu_custom_call.1} parent=1 // pred_fallthru
      _
    // Predicated region
    $region6: #{tpu_custom_call.1} parent=1 // pred_check
      _
    $region7: #{tpu_custom_call.1} parent=1 // pred_check_branch
      %12 = sbr.rel (0) target = $region9
    $region8: #{tpu_custom_call.1} parent=1 // pred_region
      _
    $region9: #{tpu_custom_call.1} parent=1 // pred_fallthru
      _
    // Predicated region
    $region10: #{tpu_custom_call.1} parent=1 // pred_check
      _
    $region11: #{tpu_custom_call.1} parent=1 // pred_check_branch
      %14 = sbr.rel (0) target = $region13
    $region12: #{tpu_custom_call.1} parent=1 // pred_region
      _
    $region13: #{tpu_custom_call.1} parent=1 // pred_fallthru
      _
    %v15 = vld [vmem:[%s0] ss:$2 sm:$0x3]
    %s16 = scalar_lea.vmem %s0, 1
    %v17 = vld [vmem:[%s16] ss:$2 sm:$0x3]
    %v18 = vld [vmem:[%s2] sm:$0xff]
    %v19 = vld [vmem:[%s2 + $0x8] sm:$0xff]
    %v20 = vld [vmem:[%s2 + $0x10] sm:$0xff]
    %v21 = vld [vmem:[%s2 + $0x18] sm:$0xff]
    %23 = vset.pattern.permute.xlu0 0
    %24 = vperm.xlu0 %23, %v18
    %v25 = vpop.permute.xlu0 %24
    %28 = vset.pattern.permute.xlu0 0
    %29 = vperm.xlu0 %28, %v19
    %v30 = vpop.permute.xlu0 %29
    %33 = vset.pattern.permute.xlu0 0
    %34 = vperm.xlu0 %33, %v20
    %v35 = vpop.permute.xlu0 %34
    %38 = vset.pattern.permute.xlu0 0
    %39 = vperm.xlu0 %38, %v21
    %v40 = vpop.permute.xlu0 %39
    %v43 = vlaneseq
    %v44 = vshrl.u32 %v43, 7
    %v45 = vsub.s32 0, %v44
    %v46 = vrot.slane %v15, %v45
    %v47 = vlaneseq
    %v48 = vshrl.u32 %v47, 7
    %v49 = vsub.s32 1, %v48
    %v50 = vrot.slane %v15, %v49
    %v53 = vmul.f32 %v25, %v46
    %v54 = vmul.f32 %v25, %v50
    %v55 = vmul.f32 %v30, %v46
    %v56 = vmul.f32 %v30, %v50
    %v57 = vmul.f32 %v35, %v46
    %v58 = vmul.f32 %v35, %v50
    %v59 = vmul.f32 %v40, %v46
    %v60 = vmul.f32 %v40, %v50
    %61 = vset.pattern.permute.xlu0 1
    %62 = vperm.xlu0 %61, %v18
    %v63 = vpop.permute.xlu0 %62
    %65 = vset.pattern.permute.xlu0 1
    %66 = vperm.xlu0 %65, %v19
    %v67 = vpop.permute.xlu0 %66
    %69 = vset.pattern.permute.xlu0 1
    %70 = vperm.xlu0 %69, %v20
    %v71 = vpop.permute.xlu0 %70
    %73 = vset.pattern.permute.xlu0 1
    %74 = vperm.xlu0 %73, %v21
    %v75 = vpop.permute.xlu0 %74
    %v78 = vlaneseq
    %v79 = vshrl.u32 %v78, 7
    %v80 = vsub.s32 0, %v79
    %v81 = vrot.slane %v17, %v80
    %v82 = vlaneseq
    %v83 = vshrl.u32 %v82, 7
    %v84 = vsub.s32 1, %v83
    %v85 = vrot.slane %v17, %v84
    %v88 = vmul.f32 %v63, %v81
    %v89 = vmul.f32 %v63, %v85
    %v90 = vmul.f32 %v67, %v81
    %v91 = vmul.f32 %v67, %v85
    %v92 = vmul.f32 %v71, %v81
    %v93 = vmul.f32 %v71, %v85
    %v94 = vmul.f32 %v75, %v81
    %v95 = vmul.f32 %v75, %v85
    %v96 = vadd.f32 %v53, %v88
    %v97 = vadd.f32 %v54, %v89
    %v98 = vadd.f32 %v55, %v90
    %v99 = vadd.f32 %v56, %v91
    %v100 = vadd.f32 %v57, %v92
    %v101 = vadd.f32 %v58, %v93
    %v102 = vadd.f32 %v59, %v94
    %v103 = vadd.f32 %v60, %v95
    %104 = vset.pattern.permute.xlu0 3
    %105 = vperm.xlu0 %104, %v18
    %v106 = vpop.permute.xlu0 %105
    %108 = vset.pattern.permute.xlu0 3
    %109 = vperm.xlu0 %108, %v19
    %v110 = vpop.permute.xlu0 %109
    %112 = vset.pattern.permute.xlu0 3
    %113 = vperm.xlu0 %112, %v20
    %v114 = vpop.permute.xlu0 %113
    %116 = vset.pattern.permute.xlu0 3
    %117 = vperm.xlu0 %116, %v21
    %v118 = vpop.permute.xlu0 %117
    %v120 = vadd.f32 %v96, %v106
    %v121 = vadd.f32 %v97, %v106
    %v122 = vadd.f32 %v98, %v110
    %v123 = vadd.f32 %v99, %v110
    %v124 = vadd.f32 %v100, %v114
    %v125 = vadd.f32 %v101, %v114
    %v126 = vadd.f32 %v102, %v118
    %v127 = vadd.f32 %v103, %v118
    %v128 = vmax.f32 %v120, 0.0
    %v129 = vmax.f32 %v121, 0.0
    %v130 = vmax.f32 %v122, 0.0
    %v131 = vmax.f32 %v123, 0.0
    %v132 = vmax.f32 %v124, 0.0
    %v133 = vmax.f32 %v125, 0.0
    %v134 = vmax.f32 %v126, 0.0
    %v135 = vmax.f32 %v127, 0.0
    %v136 = vld [vmem:[%s1] sm:$0xff]
    %v137 = vld [vmem:[%s1 + $0x8] sm:$0xff]
    %v138 = vld [vmem:[%s1 + $0x10] sm:$0xff]
    %v139 = vld [vmem:[%s1 + $0x18] sm:$0xff]
    %140 = vset.pattern.permute.xlu0 4
    %141 = vperm.xlu0 %140, %v18
    %v142 = vpop.permute.xlu0 %141
    %144 = vset.pattern.permute.xlu0 4
    %145 = vperm.xlu0 %144, %v19
    %v146 = vpop.permute.xlu0 %145
    %148 = vset.pattern.permute.xlu0 4
    %149 = vperm.xlu0 %148, %v20
    %v150 = vpop.permute.xlu0 %149
    %152 = vset.pattern.permute.xlu0 4
    %153 = vperm.xlu0 %152, %v21
    %v154 = vpop.permute.xlu0 %153
    %vm156 = vcmask 261120
    %v158 = vsel %vm156, %v136, 0
    %v161 = vsel %vm156, %v137, 0
    %v164 = vsel %vm156, %v138, 0
    %v167 = vsel %vm156, %v139, 0
    %v169 = vand.u32 %v129, 4294901760
    %170 = vmatprep.subr.mxu0 %v169
    %v171 = vand.u32 %v128, 4294901760
    %172 = vmatpush1.msra.mxu0 %v171
    %v173 = vand.u32 %v131, 4294901760
    %174 = vmatprep.subr.mxu0 %v173
    %v175 = vand.u32 %v130, 4294901760
    %176 = vmatpush1.msra.mxu0 %v175
    %v177 = vand.u32 %v133, 4294901760
    %178 = vmatprep.subr.mxu0 %v177
    %v179 = vand.u32 %v132, 4294901760
    %180 = vmatpush1.msra.mxu0 %v179
    %v181 = vand.u32 %v135, 4294901760
    %182 = vmatprep.subr.mxu0 %v181
    %v183 = vand.u32 %v134, 4294901760
    %184 = vmatpush1.msra.mxu0 %v183
    %185 = vmatprep.subr.mxu0 0.0
    %186 = vmatpush1.msra.mxu0 0.0
    %187 = vmatprep.subr.mxu0 0.0
    %188 = vmatpush1.msra.mxu0 0.0
    %189 = vmatprep.subr.mxu0 0.0
    %190 = vmatpush1.msra.mxu0 0.0
    %191 = vmatprep.subr.mxu0 0.0
    %192 = vmatpush1.msra.mxu0 0.0
    %193 = vmatprep.subr.mxu0 0.0
    %194 = vmatpush1.msra.mxu0 0.0
    %195 = vmatprep.subr.mxu0 0.0
    %196 = vmatpush1.msra.mxu0 0.0
    %197 = vmatprep.subr.mxu0 0.0
    %198 = vmatpush1.msra.mxu0 0.0
    %199 = vmatprep.subr.mxu0 0.0
    %200 = vmatpush1.msra.mxu0 0.0
    %201 = vmatprep.subr.mxu0 0.0
    %202 = vmatpush1.msra.mxu0 0.0
    %203 = vmatprep.subr.mxu0 0.0
    %204 = vmatpush1.msra.mxu0 0.0
    %205 = vmatprep.subr.mxu0 0.0
    %206 = vmatpush1.msra.mxu0 0.0
    %207 = vmatprep.subr.mxu0 0.0
    %208 = vmatpush1.msra.mxu0 0.0
    %209 = vmatprep.subr.mxu0 0.0
    %210 = vmatpush1.msra.mxu0 0.0
    %211 = vmatprep.subr.mxu0 0.0
    %212 = vmatpush1.msra.mxu0 0.0
    %213 = vmatprep.subr.mxu0 0.0
    %214 = vmatpush1.msra.mxu0 0.0
    %215 = vmatprep.subr.mxu0 0.0
    %216 = vmatpush1.msra.mxu0 0.0
    %217 = vmatprep.subr.mxu0 0.0
    %218 = vmatpush1.msra.mxu0 0.0
    %219 = vmatprep.subr.mxu0 0.0
    %220 = vmatpush1.msra.mxu0 0.0
    %221 = vmatprep.subr.mxu0 0.0
    %222 = vmatpush1.msra.mxu0 0.0
    %223 = vmatprep.subr.mxu0 0.0
    %224 = vmatpush1.msra.mxu0 0.0
    %225 = vmatprep.subr.mxu0 0.0
    %226 = vmatpush1.msra.mxu0 0.0
    %227 = vmatprep.subr.mxu0 0.0
    %228 = vmatpush1.msra.mxu0 0.0
    %229 = vmatprep.subr.mxu0 0.0
    %230 = vmatpush1.msra.mxu0 0.0
    %231 = vmatprep.subr.mxu0 0.0
    %232 = vmatpush1.msra.mxu0 0.0
    %233 = vmatprep.subr.mxu0 0.0
    %234 = vmatpush1.msra.mxu0 0.0
    %235 = vmatprep.subr.mxu0 0.0
    %236 = vmatpush1.msra.mxu0 0.0
    %237 = vmatprep.subr.mxu0 0.0
    %238 = vmatpush1.msra.mxu0 0.0
    %239 = vmatprep.subr.mxu0 0.0
    %240 = vmatpush1.msra.mxu0 0.0
    %241 = vmatprep.mubr.f32.mxu0 0.0
    %v242 = vand.u32 %v158, 4294901760
    %v243 = vsub.f32 %v158, %v242
    %v244 = vand.u32 %v243, 4294901760
    %v245 = vsub.f32 %v243, %v244
    %v246 = vand.u32 %v245, 4294901760
    %247 = vmatmul.mubr.f32.gmra.mrb[0].mxu0 %v246
    %v248 = vpop.f32.mrb[0].mxu0
    %v249 = vadd.f32 %v142, %v248
    %v250 = vpop.f32.mrb[0].mxu0
    %v251 = vadd.f32 %v142, %v250
    %252 = vmatprep.mubr.f32.mxu0 0.0
    %v253 = vand.u32 %v161, 4294901760
    %v254 = vsub.f32 %v161, %v253
    %v255 = vand.u32 %v254, 4294901760
    %v256 = vsub.f32 %v254, %v255
    %v257 = vand.u32 %v256, 4294901760
    %258 = vmatmul.mubr.f32.gmra.mrb[0].mxu0 %v257
    %v259 = vpop.f32.mrb[0].mxu0
    %v260 = vadd.f32 %v146, %v259
    %v261 = vpop.f32.mrb[0].mxu0
    %v262 = vadd.f32 %v146, %v261
    %263 = vmatprep.mubr.f32.mxu0 0.0
    %v264 = vand.u32 %v164, 4294901760
    %v265 = vsub.f32 %v164, %v264
    %v266 = vand.u32 %v265, 4294901760
    %v267 = vsub.f32 %v265, %v266
    %v268 = vand.u32 %v267, 4294901760
    %269 = vmatmul.mubr.f32.gmra.mrb[0].mxu0 %v268
    %v270 = vpop.f32.mrb[0].mxu0
    %v271 = vadd.f32 %v150, %v270
    %v272 = vpop.f32.mrb[0].mxu0
    %v273 = vadd.f32 %v150, %v272
    %274 = vmatprep.mubr.f32.mxu0 0.0
    %v275 = vand.u32 %v167, 4294901760
    %v276 = vsub.f32 %v167, %v275
    %v277 = vand.u32 %v276, 4294901760
    %v278 = vsub.f32 %v276, %v277
    %v279 = vand.u32 %v278, 4294901760
    %280 = vmatmul.mubr.f32.gmra.mrb[0].mxu0 %v279
    %v281 = vpop.f32.mrb[0].mxu0
    %v282 = vadd.f32 %v154, %v281
    %v283 = vpop.f32.mrb[0].mxu0
    %v284 = vadd.f32 %v154, %v283
    %285 = vdwg.mxu0
    %v286 = vand.u32 %v129, 4294901760
    %v287 = vsub.f32 %v129, %v286
    %v288 = vand.u32 %v287, 4294901760
    %v289 = vsub.f32 %v287, %v288
    %v290 = vand.u32 %v289, 4294901760
    %291 = vmatprep.subr.mxu0 %v290
    %v292 = vand.u32 %v128, 4294901760
    %v293 = vsub.f32 %v128, %v292
    %v294 = vand.u32 %v293, 4294901760
    %v295 = vsub.f32 %v293, %v294
    %v296 = vand.u32 %v295, 4294901760
    %297 = vmatpush1.msra.mxu0 %v296
    %v298 = vand.u32 %v131, 4294901760
    %v299 = vsub.f32 %v131, %v298
    %v300 = vand.u32 %v299, 4294901760
    %v301 = vsub.f32 %v299, %v300
    %v302 = vand.u32 %v301, 4294901760
    %303 = vmatprep.subr.mxu0 %v302
    %v304 = vand.u32 %v130, 4294901760
    %v305 = vsub.f32 %v130, %v304
    %v306 = vand.u32 %v305, 4294901760
    %v307 = vsub.f32 %v305, %v306
    %v308 = vand.u32 %v307, 4294901760
    %309 = vmatpush1.msra.mxu0 %v308
    %v310 = vand.u32 %v133, 4294901760
    %v311 = vsub.f32 %v133, %v310
    %v312 = vand.u32 %v311, 4294901760
    %v313 = vsub.f32 %v311, %v312
    %v314 = vand.u32 %v313, 4294901760
    %315 = vmatprep.subr.mxu0 %v314
    %v316 = vand.u32 %v132, 4294901760
    %v317 = vsub.f32 %v132, %v316
    %v318 = vand.u32 %v317, 4294901760
    %v319 = vsub.f32 %v317, %v318
    %v320 = vand.u32 %v319, 4294901760
    %321 = vmatpush1.msra.mxu0 %v320
    %v322 = vand.u32 %v135, 4294901760
    %v323 = vsub.f32 %v135, %v322
    %v324 = vand.u32 %v323, 4294901760
    %v325 = vsub.f32 %v323, %v324
    %v326 = vand.u32 %v325, 4294901760
    %327 = vmatprep.subr.mxu0 %v326
    %v328 = vand.u32 %v134, 4294901760
    %v329 = vsub.f32 %v134, %v328
    %v330 = vand.u32 %v329, 4294901760
    %v331 = vsub.f32 %v329, %v330
    %v332 = vand.u32 %v331, 4294901760
    %333 = vmatpush1.msra.mxu0 %v332
    %334 = vmatprep.subr.mxu0 0.0
    %335 = vmatpush1.msra.mxu0 0.0
    %336 = vmatprep.subr.mxu0 0.0
    %337 = vmatpush1.msra.mxu0 0.0
    %338 = vmatprep.subr.mxu0 0.0
    %339 = vmatpush1.msra.mxu0 0.0
    %340 = vmatprep.subr.mxu0 0.0
    %341 = vmatpush1.msra.mxu0 0.0
    %342 = vmatprep.subr.mxu0 0.0
    %343 = vmatpush1.msra.mxu0 0.0
    %344 = vmatprep.subr.mxu0 0.0
    %345 = vmatpush1.msra.mxu0 0.0
    %346 = vmatprep.subr.mxu0 0.0
    %347 = vmatpush1.msra.mxu0 0.0
    %348 = vmatprep.subr.mxu0 0.0
    %349 = vmatpush1.msra.mxu0 0.0
    %350 = vmatprep.subr.mxu0 0.0
    %351 = vmatpush1.msra.mxu0 0.0
    %352 = vmatprep.subr.mxu0 0.0
    %353 = vmatpush1.msra.mxu0 0.0
    %354 = vmatprep.subr.mxu0 0.0
    %355 = vmatpush1.msra.mxu0 0.0
    %356 = vmatprep.subr.mxu0 0.0
    %357 = vmatpush1.msra.mxu0 0.0
    %358 = vmatprep.subr.mxu0 0.0
    %359 = vmatpush1.msra.mxu0 0.0
    %360 = vmatprep.subr.mxu0 0.0
    %361 = vmatpush1.msra.mxu0 0.0
    %362 = vmatprep.subr.mxu0 0.0
    %363 = vmatpush1.msra.mxu0 0.0
    %364 = vmatprep.subr.mxu0 0.0
    %365 = vmatpush1.msra.mxu0 0.0
    %366 = vmatprep.subr.mxu0 0.0
    %367 = vmatpush1.msra.mxu0 0.0
    %368 = vmatprep.subr.mxu0 0.0
    %369 = vmatpush1.msra.mxu0 0.0
    %370 = vmatprep.subr.mxu0 0.0
    %371 = vmatpush1.msra.mxu0 0.0
    %372 = vmatprep.subr.mxu0 0.0
    %373 = vmatpush1.msra.mxu0 0.0
    %374 = vmatprep.subr.mxu0 0.0
    %375 = vmatpush1.msra.mxu0 0.0
    %376 = vmatprep.subr.mxu0 0.0
    %377 = vmatpush1.msra.mxu0 0.0
    %378 = vmatprep.subr.mxu0 0.0
    %379 = vmatpush1.msra.mxu0 0.0
    %380 = vmatprep.subr.mxu0 0.0
    %381 = vmatpush1.msra.mxu0 0.0
    %382 = vmatprep.subr.mxu0 0.0
    %383 = vmatpush1.msra.mxu0 0.0
    %384 = vmatprep.subr.mxu0 0.0
    %385 = vmatpush1.msra.mxu0 0.0
    %386 = vmatprep.subr.mxu0 0.0
    %387 = vmatpush1.msra.mxu0 0.0
    %388 = vmatprep.subr.mxu0 0.0
    %389 = vmatpush1.msra.mxu0 0.0
    %390 = vmatprep.mubr.f32.mxu0 0.0
    %v391 = vand.u32 %v158, 4294901760
    %392 = vmatmul.mubr.f32.gmra.mrb[0].mxu0 %v391
    %v393 = vpop.f32.mrb[0].mxu0
    %v394 = vadd.f32 %v249, %v393
    %v395 = vpop.f32.mrb[0].mxu0
    %v396 = vadd.f32 %v251, %v395
    %397 = vmatprep.mubr.f32.mxu0 0.0
    %v398 = vand.u32 %v161, 4294901760
    %399 = vmatmul.mubr.f32.gmra.mrb[0].mxu0 %v398
    %v400 = vpop.f32.mrb[0].mxu0
    %v401 = vadd.f32 %v260, %v400
    %v402 = vpop.f32.mrb[0].mxu0
    %v403 = vadd.f32 %v262, %v402
    %404 = vmatprep.mubr.f32.mxu0 0.0
    %v405 = vand.u32 %v164, 4294901760
    %406 = vmatmul.mubr.f32.gmra.mrb[0].mxu0 %v405
    %v407 = vpop.f32.mrb[0].mxu0
    %v408 = vadd.f32 %v271, %v407
    %v409 = vpop.f32.mrb[0].mxu0
    %v410 = vadd.f32 %v273, %v409
    %411 = vmatprep.mubr.f32.mxu0 0.0
    %v412 = vand.u32 %v167, 4294901760
    %413 = vmatmul.mubr.f32.gmra.mrb[0].mxu0 %v412
    %v414 = vpop.f32.mrb[0].mxu0
    %v415 = vadd.f32 %v282, %v414
    %v416 = vpop.f32.mrb[0].mxu0
    %v417 = vadd.f32 %v284, %v416
    %418 = vdwg.mxu0
    %v419 = vand.u32 %v129, 4294901760
    %v420 = vsub.f32 %v129, %v419
    %421 = vmatprep.subr.mxu0 %v420
    %v422 = vand.u32 %v128, 4294901760
    %v423 = vsub.f32 %v128, %v422
    %424 = vmatpush1.msra.mxu0 %v423
    %v425 = vand.u32 %v131, 4294901760
    %v426 = vsub.f32 %v131, %v425
    %427 = vmatprep.subr.mxu0 %v426
    %v428 = vand.u32 %v130, 4294901760
    %v429 = vsub.f32 %v130, %v428
    %430 = vmatpush1.msra.mxu0 %v429
    %v431 = vand.u32 %v133, 4294901760
    %v432 = vsub.f32 %v133, %v431
    %433 = vmatprep.subr.mxu0 %v432
    %v434 = vand.u32 %v132, 4294901760
    %v435 = vsub.f32 %v132, %v434
    %436 = vmatpush1.msra.mxu0 %v435
    %v437 = vand.u32 %v135, 4294901760
    %v438 = vsub.f32 %v135, %v437
    %439 = vmatprep.subr.mxu0 %v438
    %v440 = vand.u32 %v134, 4294901760
    %v441 = vsub.f32 %v134, %v440
    %442 = vmatpush1.msra.mxu0 %v441
    %443 = vmatprep.subr.mxu0 0.0
    %444 = vmatpush1.msra.mxu0 0.0
    %445 = vmatprep.subr.mxu0 0.0
    %446 = vmatpush1.msra.mxu0 0.0
    %447 = vmatprep.subr.mxu0 0.0
    %448 = vmatpush1.msra.mxu0 0.0
    %449 = vmatprep.subr.mxu0 0.0
    %450 = vmatpush1.msra.mxu0 0.0
    %451 = vmatprep.subr.mxu0 0.0
    %452 = vmatpush1.msra.mxu0 0.0
    %453 = vmatprep.subr.mxu0 0.0
    %454 = vmatpush1.msra.mxu0 0.0
    %455 = vmatprep.subr.mxu0 0.0
    %456 = vmatpush1.msra.mxu0 0.0
    %457 = vmatprep.subr.mxu0 0.0
    %458 = vmatpush1.msra.mxu0 0.0
    %459 = vmatprep.subr.mxu0 0.0
    %460 = vmatpush1.msra.mxu0 0.0
    %461 = vmatprep.subr.mxu0 0.0
    %462 = vmatpush1.msra.mxu0 0.0
    %463 = vmatprep.subr.mxu0 0.0
    %464 = vmatpush1.msra.mxu0 0.0
    %465 = vmatprep.subr.mxu0 0.0
    %466 = vmatpush1.msra.mxu0 0.0
    %467 = vmatprep.subr.mxu0 0.0
    %468 = vmatpush1.msra.mxu0 0.0
    %469 = vmatprep.subr.mxu0 0.0
    %470 = vmatpush1.msra.mxu0 0.0
    %471 = vmatprep.subr.mxu0 0.0
    %472 = vmatpush1.msra.mxu0 0.0
    %473 = vmatprep.subr.mxu0 0.0
    %474 = vmatpush1.msra.mxu0 0.0
    %475 = vmatprep.subr.mxu0 0.0
    %476 = vmatpush1.msra.mxu0 0.0
    %477 = vmatprep.subr.mxu0 0.0
    %478 = vmatpush1.msra.mxu0 0.0
    %479 = vmatprep.subr.mxu0 0.0
    %480 = vmatpush1.msra.mxu0 0.0
    %481 = vmatprep.subr.mxu0 0.0
    %482 = vmatpush1.msra.mxu0 0.0
    %483 = vmatprep.subr.mxu0 0.0
    %484 = vmatpush1.msra.mxu0 0.0
    %485 = vmatprep.subr.mxu0 0.0
    %486 = vmatpush1.msra.mxu0 0.0
    %487 = vmatprep.subr.mxu0 0.0
    %488 = vmatpush1.msra.mxu0 0.0
    %489 = vmatprep.subr.mxu0 0.0
    %490 = vmatpush1.msra.mxu0 0.0
    %491 = vmatprep.subr.mxu0 0.0
    %492 = vmatpush1.msra.mxu0 0.0
    %493 = vmatprep.subr.mxu0 0.0
    %494 = vmatpush1.msra.mxu0 0.0
    %495 = vmatprep.subr.mxu0 0.0
    %496 = vmatpush1.msra.mxu0 0.0
    %497 = vmatprep.subr.mxu0 0.0
    %498 = vmatpush1.msra.mxu0 0.0
    %499 = vmatprep.mubr.f32.mxu0 0.0
    %v500 = vand.u32 %v158, 4294901760
    %v501 = vsub.f32 %v158, %v500
    %502 = vmatmul.mubr.f32.gmra.mrb[0].mxu0 %v501
    %v503 = vpop.f32.mrb[0].mxu0
    %v504 = vadd.f32 %v394, %v503
    %v505 = vpop.f32.mrb[0].mxu0
    %v506 = vadd.f32 %v396, %v505
    %507 = vmatprep.mubr.f32.mxu0 0.0
    %v508 = vand.u32 %v161, 4294901760
    %v509 = vsub.f32 %v161, %v508
    %510 = vmatmul.mubr.f32.gmra.mrb[0].mxu0 %v509
    %v511 = vpop.f32.mrb[0].mxu0
    %v512 = vadd.f32 %v401, %v511
    %v513 = vpop.f32.mrb[0].mxu0
    %v514 = vadd.f32 %v403, %v513
    %515 = vmatprep.mubr.f32.mxu0 0.0
    %v516 = vand.u32 %v164, 4294901760
    %v517 = vsub.f32 %v164, %v516
    %518 = vmatmul.mubr.f32.gmra.mrb[0].mxu0 %v517
    %v519 = vpop.f32.mrb[0].mxu0
    %v520 = vadd.f32 %v408, %v519
    %v521 = vpop.f32.mrb[0].mxu0
    %v522 = vadd.f32 %v410, %v521
    %523 = vmatprep.mubr.f32.mxu0 0.0
    %v524 = vand.u32 %v167, 4294901760
    %v525 = vsub.f32 %v167, %v524
    %526 = vmatmul.mubr.f32.gmra.mrb[0].mxu0 %v525
    %v527 = vpop.f32.mrb[0].mxu0
    %v528 = vadd.f32 %v415, %v527
    %v529 = vpop.f32.mrb[0].mxu0
    %v530 = vadd.f32 %v417, %v529
    %531 = vdwg.mxu0
    %v532 = vand.u32 %v129, 4294901760
    %533 = vmatprep.subr.mxu0 %v532
    %v534 = vand.u32 %v128, 4294901760
    %535 = vmatpush1.msra.mxu0 %v534
    %v536 = vand.u32 %v131, 4294901760
    %537 = vmatprep.subr.mxu0 %v536
    %v538 = vand.u32 %v130, 4294901760
    %539 = vmatpush1.msra.mxu0 %v538
    %v540 = vand.u32 %v133, 4294901760
    %541 = vmatprep.subr.mxu0 %v540
    %v542 = vand.u32 %v132, 4294901760
    %543 = vmatpush1.msra.mxu0 %v542
    %v544 = vand.u32 %v135, 4294901760
    %545 = vmatprep.subr.mxu0 %v544
    %v546 = vand.u32 %v134, 4294901760
    %547 = vmatpush1.msra.mxu0 %v546
    %548 = vmatprep.subr.mxu0 0.0
    %549 = vmatpush1.msra.mxu0 0.0
    %550 = vmatprep.subr.mxu0 0.0
    %551 = vmatpush1.msra.mxu0 0.0
    %552 = vmatprep.subr.mxu0 0.0
    %553 = vmatpush1.msra.mxu0 0.0
    %554 = vmatprep.subr.mxu0 0.0
    %555 = vmatpush1.msra.mxu0 0.0
    %556 = vmatprep.subr.mxu0 0.0
    %557 = vmatpush1.msra.mxu0 0.0
    %558 = vmatprep.subr.mxu0 0.0
    %559 = vmatpush1.msra.mxu0 0.0
    %560 = vmatprep.subr.mxu0 0.0
    %561 = vmatpush1.msra.mxu0 0.0
    %562 = vmatprep.subr.mxu0 0.0
    %563 = vmatpush1.msra.mxu0 0.0
    %564 = vmatprep.subr.mxu0 0.0
    %565 = vmatpush1.msra.mxu0 0.0
    %566 = vmatprep.subr.mxu0 0.0
    %567 = vmatpush1.msra.mxu0 0.0
    %568 = vmatprep.subr.mxu0 0.0
    %569 = vmatpush1.msra.mxu0 0.0
    %570 = vmatprep.subr.mxu0 0.0
    %571 = vmatpush1.msra.mxu0 0.0
    %572 = vmatprep.subr.mxu0 0.0
    %573 = vmatpush1.msra.mxu0 0.0
    %574 = vmatprep.subr.mxu0 0.0
    %575 = vmatpush1.msra.mxu0 0.0
    %576 = vmatprep.subr.mxu0 0.0
    %577 = vmatpush1.msra.mxu0 0.0
    %578 = vmatprep.subr.mxu0 0.0
    %579 = vmatpush1.msra.mxu0 0.0
    %580 = vmatprep.subr.mxu0 0.0
    %581 = vmatpush1.msra.mxu0 0.0
    %582 = vmatprep.subr.mxu0 0.0
    %583 = vmatpush1.msra.mxu0 0.0
    %584 = vmatprep.subr.mxu0 0.0
    %585 = vmatpush1.msra.mxu0 0.0
    %586 = vmatprep.subr.mxu0 0.0
    %587 = vmatpush1.msra.mxu0 0.0
    %588 = vmatprep.subr.mxu0 0.0
    %589 = vmatpush1.msra.mxu0 0.0
    %590 = vmatprep.subr.mxu0 0.0
    %591 = vmatpush1.msra.mxu0 0.0
    %592 = vmatprep.subr.mxu0 0.0
    %593 = vmatpush1.msra.mxu0 0.0
    %594 = vmatprep.subr.mxu0 0.0
    %595 = vmatpush1.msra.mxu0 0.0
    %596 = vmatprep.subr.mxu0 0.0
    %597 = vmatpush1.msra.mxu0 0.0
    %598 = vmatprep.subr.mxu0 0.0
    %599 = vmatpush1.msra.mxu0 0.0
    %600 = vmatprep.subr.mxu0 0.0
    %601 = vmatpush1.msra.mxu0 0.0
    %602 = vmatprep.subr.mxu0 0.0
    %603 = vmatpush1.msra.mxu0 0.0
    %604 = vmatprep.mubr.f32.mxu0 0.0
    %v605 = vand.u32 %v158, 4294901760
    %v606 = vsub.f32 %v158, %v605
    %v607 = vand.u32 %v606, 4294901760
    %608 = vmatmul.mubr.f32.gmra.mrb[0].mxu0 %v607
    %v609 = vpop.f32.mrb[0].mxu0
    %v610 = vadd.f32 %v504, %v609
    %v611 = vpop.f32.mrb[0].mxu0
    %v612 = vadd.f32 %v506, %v611
    %613 = vmatprep.mubr.f32.mxu0 0.0
    %v614 = vand.u32 %v161, 4294901760
    %v615 = vsub.f32 %v161, %v614
    %v616 = vand.u32 %v615, 4294901760
    %617 = vmatmul.mubr.f32.gmra.mrb[0].mxu0 %v616
    %v618 = vpop.f32.mrb[0].mxu0
    %v619 = vadd.f32 %v512, %v618
    %v620 = vpop.f32.mrb[0].mxu0
    %v621 = vadd.f32 %v514, %v620
    %622 = vmatprep.mubr.f32.mxu0 0.0
    %v623 = vand.u32 %v164, 4294901760
    %v624 = vsub.f32 %v164, %v623
    %v625 = vand.u32 %v624, 4294901760
    %626 = vmatmul.mubr.f32.gmra.mrb[0].mxu0 %v625
    %v627 = vpop.f32.mrb[0].mxu0
    %v628 = vadd.f32 %v520, %v627
    %v629 = vpop.f32.mrb[0].mxu0
    %v630 = vadd.f32 %v522, %v629
    %631 = vmatprep.mubr.f32.mxu0 0.0
    %v632 = vand.u32 %v167, 4294901760
    %v633 = vsub.f32 %v167, %v632
    %v634 = vand.u32 %v633, 4294901760
    %635 = vmatmul.mubr.f32.gmra.mrb[0].mxu0 %v634
    %v636 = vpop.f32.mrb[0].mxu0
    %v637 = vadd.f32 %v528, %v636
    %v638 = vpop.f32.mrb[0].mxu0
    %v639 = vadd.f32 %v530, %v638
    %640 = vdwg.mxu0
    %v641 = vand.u32 %v129, 4294901760
    %v642 = vsub.f32 %v129, %v641
    %v643 = vand.u32 %v642, 4294901760
    %644 = vmatprep.subr.mxu0 %v643
    %v645 = vand.u32 %v128, 4294901760
    %v646 = vsub.f32 %v128, %v645
    %v647 = vand.u32 %v646, 4294901760
    %648 = vmatpush1.msra.mxu0 %v647
    %v649 = vand.u32 %v131, 4294901760
    %v650 = vsub.f32 %v131, %v649
    %v651 = vand.u32 %v650, 4294901760
    %652 = vmatprep.subr.mxu0 %v651
    %v653 = vand.u32 %v130, 4294901760
    %v654 = vsub.f32 %v130, %v653
    %v655 = vand.u32 %v654, 4294901760
    %656 = vmatpush1.msra.mxu0 %v655
    %v657 = vand.u32 %v133, 4294901760
    %v658 = vsub.f32 %v133, %v657
    %v659 = vand.u32 %v658, 4294901760
    %660 = vmatprep.subr.mxu0 %v659
    %v661 = vand.u32 %v132, 4294901760
    %v662 = vsub.f32 %v132, %v661
    %v663 = vand.u32 %v662, 4294901760
    %664 = vmatpush1.msra.mxu0 %v663
    %v665 = vand.u32 %v135, 4294901760
    %v666 = vsub.f32 %v135, %v665
    %v667 = vand.u32 %v666, 4294901760
    %668 = vmatprep.subr.mxu0 %v667
    %v669 = vand.u32 %v134, 4294901760
    %v670 = vsub.f32 %v134, %v669
    %v671 = vand.u32 %v670, 4294901760
    %672 = vmatpush1.msra.mxu0 %v671
    %673 = vmatprep.subr.mxu0 0.0
    %674 = vmatpush1.msra.mxu0 0.0
    %675 = vmatprep.subr.mxu0 0.0
    %676 = vmatpush1.msra.mxu0 0.0
    %677 = vmatprep.subr.mxu0 0.0
    %678 = vmatpush1.msra.mxu0 0.0
    %679 = vmatprep.subr.mxu0 0.0
    %680 = vmatpush1.msra.mxu0 0.0
    %681 = vmatprep.subr.mxu0 0.0
    %682 = vmatpush1.msra.mxu0 0.0
    %683 = vmatprep.subr.mxu0 0.0
    %684 = vmatpush1.msra.mxu0 0.0
    %685 = vmatprep.subr.mxu0 0.0
    %686 = vmatpush1.msra.mxu0 0.0
    %687 = vmatprep.subr.mxu0 0.0
    %688 = vmatpush1.msra.mxu0 0.0
    %689 = vmatprep.subr.mxu0 0.0
    %690 = vmatpush1.msra.mxu0 0.0
    %691 = vmatprep.subr.mxu0 0.0
    %692 = vmatpush1.msra.mxu0 0.0
    %693 = vmatprep.subr.mxu0 0.0
    %694 = vmatpush1.msra.mxu0 0.0
    %695 = vmatprep.subr.mxu0 0.0
    %696 = vmatpush1.msra.mxu0 0.0
    %697 = vmatprep.subr.mxu0 0.0
    %698 = vmatpush1.msra.mxu0 0.0
    %699 = vmatprep.subr.mxu0 0.0
    %700 = vmatpush1.msra.mxu0 0.0
    %701 = vmatprep.subr.mxu0 0.0
    %702 = vmatpush1.msra.mxu0 0.0
    %703 = vmatprep.subr.mxu0 0.0
    %704 = vmatpush1.msra.mxu0 0.0
    %705 = vmatprep.subr.mxu0 0.0
    %706 = vmatpush1.msra.mxu0 0.0
    %707 = vmatprep.subr.mxu0 0.0
    %708 = vmatpush1.msra.mxu0 0.0
    %709 = vmatprep.subr.mxu0 0.0
    %710 = vmatpush1.msra.mxu0 0.0
    %711 = vmatprep.subr.mxu0 0.0
    %712 = vmatpush1.msra.mxu0 0.0
    %713 = vmatprep.subr.mxu0 0.0
    %714 = vmatpush1.msra.mxu0 0.0
    %715 = vmatprep.subr.mxu0 0.0
    %716 = vmatpush1.msra.mxu0 0.0
    %717 = vmatprep.subr.mxu0 0.0
    %718 = vmatpush1.msra.mxu0 0.0
    %719 = vmatprep.subr.mxu0 0.0
    %720 = vmatpush1.msra.mxu0 0.0
    %721 = vmatprep.subr.mxu0 0.0
    %722 = vmatpush1.msra.mxu0 0.0
    %723 = vmatprep.subr.mxu0 0.0
    %724 = vmatpush1.msra.mxu0 0.0
    %725 = vmatprep.subr.mxu0 0.0
    %726 = vmatpush1.msra.mxu0 0.0
    %727 = vmatprep.subr.mxu0 0.0
    %728 = vmatpush1.msra.mxu0 0.0
    %729 = vmatprep.mubr.f32.mxu0 0.0
    %v730 = vand.u32 %v158, 4294901760
    %731 = vmatmul.mubr.f32.gmra.mrb[0].mxu0 %v730
    %v732 = vpop.f32.mrb[0].mxu0
    %v733 = vadd.f32 %v610, %v732
    %v734 = vpop.f32.mrb[0].mxu0
    %v735 = vadd.f32 %v612, %v734
    %736 = vmatprep.mubr.f32.mxu0 0.0
    %v737 = vand.u32 %v161, 4294901760
    %738 = vmatmul.mubr.f32.gmra.mrb[0].mxu0 %v737
    %v739 = vpop.f32.mrb[0].mxu0
    %v740 = vadd.f32 %v619, %v739
    %v741 = vpop.f32.mrb[0].mxu0
    %v742 = vadd.f32 %v621, %v741
    %743 = vmatprep.mubr.f32.mxu0 0.0
    %v744 = vand.u32 %v164, 4294901760
    %745 = vmatmul.mubr.f32.gmra.mrb[0].mxu0 %v744
    %v746 = vpop.f32.mrb[0].mxu0
    %v747 = vadd.f32 %v628, %v746
    %v748 = vpop.f32.mrb[0].mxu0
    %v749 = vadd.f32 %v630, %v748
    %750 = vmatprep.mubr.f32.mxu0 0.0
    %v751 = vand.u32 %v167, 4294901760
    %752 = vmatmul.mubr.f32.gmra.mrb[0].mxu0 %v751
    %v753 = vpop.f32.mrb[0].mxu0
    %v754 = vadd.f32 %v637, %v753
    %v755 = vpop.f32.mrb[0].mxu0
    %v756 = vadd.f32 %v639, %v755
    %757 = vdwg.mxu0
    %v758 = vand.u32 %v129, 4294901760
    %759 = vmatprep.subr.mxu0 %v758
    %v760 = vand.u32 %v128, 4294901760
    %761 = vmatpush1.msra.mxu0 %v760
    %v762 = vand.u32 %v131, 4294901760
    %763 = vmatprep.subr.mxu0 %v762
    %v764 = vand.u32 %v130, 4294901760
    %765 = vmatpush1.msra.mxu0 %v764
    %v766 = vand.u32 %v133, 4294901760
    %767 = vmatprep.subr.mxu0 %v766
    %v768 = vand.u32 %v132, 4294901760
    %769 = vmatpush1.msra.mxu0 %v768
    %v770 = vand.u32 %v135, 4294901760
    %771 = vmatprep.subr.mxu0 %v770
    %v772 = vand.u32 %v134, 4294901760
    %773 = vmatpush1.msra.mxu0 %v772
    %774 = vmatprep.subr.mxu0 0.0
    %775 = vmatpush1.msra.mxu0 0.0
    %776 = vmatprep.subr.mxu0 0.0
    %777 = vmatpush1.msra.mxu0 0.0
    %778 = vmatprep.subr.mxu0 0.0
    %779 = vmatpush1.msra.mxu0 0.0
    %780 = vmatprep.subr.mxu0 0.0
    %781 = vmatpush1.msra.mxu0 0.0
    %782 = vmatprep.subr.mxu0 0.0
    %783 = vmatpush1.msra.mxu0 0.0
    %784 = vmatprep.subr.mxu0 0.0
    %785 = vmatpush1.msra.mxu0 0.0
    %786 = vmatprep.subr.mxu0 0.0
    %787 = vmatpush1.msra.mxu0 0.0
    %788 = vmatprep.subr.mxu0 0.0
    %789 = vmatpush1.msra.mxu0 0.0
    %790 = vmatprep.subr.mxu0 0.0
    %791 = vmatpush1.msra.mxu0 0.0
    %792 = vmatprep.subr.mxu0 0.0
    %793 = vmatpush1.msra.mxu0 0.0
    %794 = vmatprep.subr.mxu0 0.0
    %795 = vmatpush1.msra.mxu0 0.0
    %796 = vmatprep.subr.mxu0 0.0
    %797 = vmatpush1.msra.mxu0 0.0
    %798 = vmatprep.subr.mxu0 0.0
    %799 = vmatpush1.msra.mxu0 0.0
    %800 = vmatprep.subr.mxu0 0.0
    %801 = vmatpush1.msra.mxu0 0.0
    %802 = vmatprep.subr.mxu0 0.0
    %803 = vmatpush1.msra.mxu0 0.0
    %804 = vmatprep.subr.mxu0 0.0
    %805 = vmatpush1.msra.mxu0 0.0
    %806 = vmatprep.subr.mxu0 0.0
    %807 = vmatpush1.msra.mxu0 0.0
    %808 = vmatprep.subr.mxu0 0.0
    %809 = vmatpush1.msra.mxu0 0.0
    %810 = vmatprep.subr.mxu0 0.0
    %811 = vmatpush1.msra.mxu0 0.0
    %812 = vmatprep.subr.mxu0 0.0
    %813 = vmatpush1.msra.mxu0 0.0
    %814 = vmatprep.subr.mxu0 0.0
    %815 = vmatpush1.msra.mxu0 0.0
    %816 = vmatprep.subr.mxu0 0.0
    %817 = vmatpush1.msra.mxu0 0.0
    %818 = vmatprep.subr.mxu0 0.0
    %819 = vmatpush1.msra.mxu0 0.0
    %820 = vmatprep.subr.mxu0 0.0
    %821 = vmatpush1.msra.mxu0 0.0
    %822 = vmatprep.subr.mxu0 0.0
    %823 = vmatpush1.msra.mxu0 0.0
    %824 = vmatprep.subr.mxu0 0.0
    %825 = vmatpush1.msra.mxu0 0.0
    %826 = vmatprep.subr.mxu0 0.0
    %827 = vmatpush1.msra.mxu0 0.0
    %828 = vmatprep.subr.mxu0 0.0
    %829 = vmatpush1.msra.mxu0 0.0
    %830 = vmatprep.mubr.f32.mxu0 0.0
    %v831 = vand.u32 %v158, 4294901760
    %832 = vmatmul.mubr.f32.gmra.mrb[0].mxu0 %v831
    %v833 = vpop.f32.mrb[0].mxu0
    %v834 = vadd.f32 %v733, %v833
    %v835 = vpop.f32.mrb[0].mxu0
    %v836 = vadd.f32 %v735, %v835
    %837 = vmatprep.mubr.f32.mxu0 0.0
    %v838 = vand.u32 %v161, 4294901760
    %839 = vmatmul.mubr.f32.gmra.mrb[0].mxu0 %v838
    %v840 = vpop.f32.mrb[0].mxu0
    %v841 = vadd.f32 %v740, %v840
    %v842 = vpop.f32.mrb[0].mxu0
    %v843 = vadd.f32 %v742, %v842
    %844 = vmatprep.mubr.f32.mxu0 0.0
    %v845 = vand.u32 %v164, 4294901760
    %846 = vmatmul.mubr.f32.gmra.mrb[0].mxu0 %v845
    %v847 = vpop.f32.mrb[0].mxu0
    %v848 = vadd.f32 %v747, %v847
    %v849 = vpop.f32.mrb[0].mxu0
    %v850 = vadd.f32 %v749, %v849
    %851 = vmatprep.mubr.f32.mxu0 0.0
    %v852 = vand.u32 %v167, 4294901760
    %853 = vmatmul.mubr.f32.gmra.mrb[0].mxu0 %v852
    %v854 = vpop.f32.mrb[0].mxu0
    %v855 = vadd.f32 %v754, %v854
    %v856 = vpop.f32.mrb[0].mxu0
    %v857 = vadd.f32 %v756, %v856
    %858 = vdwg.mxu0
    %v859 = vmax.f32 %v834, 0.0
    %v860 = vmax.f32 %v836, 0.0
    %v861 = vmax.f32 %v841, 0.0
    %v862 = vmax.f32 %v843, 0.0
    %v863 = vmax.f32 %v848, 0.0
    %v864 = vmax.f32 %v850, 0.0
    %v865 = vmax.f32 %v855, 0.0
    %v866 = vmax.f32 %v857, 0.0
    %v867 = vld [vmem:[%s1 + $0x20] sm:$0xff]
    %v868 = vld [vmem:[%s1 + $0x28] sm:$0xff]
    %v869 = vld [vmem:[%s1 + $0x30] sm:$0xff]
    %v870 = vld [vmem:[%s1 + $0x38] sm:$0xff]
    %871 = vset.pattern.permute.xlu0 5
    %872 = vperm.xlu0 %871, %v18
    %v873 = vpop.permute.xlu0 %872
    %875 = vset.pattern.permute.xlu0 5
    %876 = vperm.xlu0 %875, %v19
    %v877 = vpop.permute.xlu0 %876
    %879 = vset.pattern.permute.xlu0 5
    %880 = vperm.xlu0 %879, %v20
    %v881 = vpop.permute.xlu0 %880
    %883 = vset.pattern.permute.xlu0 5
    %884 = vperm.xlu0 %883, %v21
    %v885 = vpop.permute.xlu0 %884
    %v888 = vsel %vm156, %v867, 0
    %v891 = vsel %vm156, %v868, 0
    %v894 = vsel %vm156, %v869, 0
    %v897 = vsel %vm156, %v870, 0
    %v899 = vand.u32 %v860, 4294901760
    %900 = vmatprep.subr.mxu0 %v899
    %v901 = vand.u32 %v859, 4294901760
    %902 = vmatpush1.msra.mxu0 %v901
    %v903 = vand.u32 %v862, 4294901760
    %904 = vmatprep.subr.mxu0 %v903
    %v905 = vand.u32 %v861, 4294901760
    %906 = vmatpush1.msra.mxu0 %v905
    %v907 = vand.u32 %v864, 4294901760
    %908 = vmatprep.subr.mxu0 %v907
    %v909 = vand.u32 %v863, 4294901760
    %910 = vmatpush1.msra.mxu0 %v909
    %v911 = vand.u32 %v866, 4294901760
    %912 = vmatprep.subr.mxu0 %v911
    %v913 = vand.u32 %v865, 4294901760
    %914 = vmatpush1.msra.mxu0 %v913
    %915 = vmatprep.subr.mxu0 0.0
    %916 = vmatpush1.msra.mxu0 0.0
    %917 = vmatprep.subr.mxu0 0.0
    %918 = vmatpush1.msra.mxu0 0.0
    %919 = vmatprep.subr.mxu0 0.0
    %920 = vmatpush1.msra.mxu0 0.0
    %921 = vmatprep.subr.mxu0 0.0
    %922 = vmatpush1.msra.mxu0 0.0
    %923 = vmatprep.subr.mxu0 0.0
    %924 = vmatpush1.msra.mxu0 0.0
    %925 = vmatprep.subr.mxu0 0.0
    %926 = vmatpush1.msra.mxu0 0.0
    %927 = vmatprep.subr.mxu0 0.0
    %928 = vmatpush1.msra.mxu0 0.0
    %929 = vmatprep.subr.mxu0 0.0
    %930 = vmatpush1.msra.mxu0 0.0
    %931 = vmatprep.subr.mxu0 0.0
    %932 = vmatpush1.msra.mxu0 0.0
    %933 = vmatprep.subr.mxu0 0.0
    %934 = vmatpush1.msra.mxu0 0.0
    %935 = vmatprep.subr.mxu0 0.0
    %936 = vmatpush1.msra.mxu0 0.0
    %937 = vmatprep.subr.mxu0 0.0
    %938 = vmatpush1.msra.mxu0 0.0
    %939 = vmatprep.subr.mxu0 0.0
    %940 = vmatpush1.msra.mxu0 0.0
    %941 = vmatprep.subr.mxu0 0.0
    %942 = vmatpush1.msra.mxu0 0.0
    %943 = vmatprep.subr.mxu0 0.0
    %944 = vmatpush1.msra.mxu0 0.0
    %945 = vmatprep.subr.mxu0 0.0
    %946 = vmatpush1.msra.mxu0 0.0
    %947 = vmatprep.subr.mxu0 0.0
    %948 = vmatpush1.msra.mxu0 0.0
    %949 = vmatprep.subr.mxu0 0.0
    %950 = vmatpush1.msra.mxu0 0.0
    %951 = vmatprep.subr.mxu0 0.0
    %952 = vmatpush1.msra.mxu0 0.0
    %953 = vmatprep.subr.mxu0 0.0
    %954 = vmatpush1.msra.mxu0 0.0
    %955 = vmatprep.subr.mxu0 0.0
    %956 = vmatpush1.msra.mxu0 0.0
    %957 = vmatprep.subr.mxu0 0.0
    %958 = vmatpush1.msra.mxu0 0.0
    %959 = vmatprep.subr.mxu0 0.0
    %960 = vmatpush1.msra.mxu0 0.0
    %961 = vmatprep.subr.mxu0 0.0
    %962 = vmatpush1.msra.mxu0 0.0
    %963 = vmatprep.subr.mxu0 0.0
    %964 = vmatpush1.msra.mxu0 0.0
    %965 = vmatprep.subr.mxu0 0.0
    %966 = vmatpush1.msra.mxu0 0.0
    %967 = vmatprep.subr.mxu0 0.0
    %968 = vmatpush1.msra.mxu0 0.0
    %969 = vmatprep.subr.mxu0 0.0
    %970 = vmatpush1.msra.mxu0 0.0
    %971 = vmatprep.mubr.f32.mxu0 0.0
    %v972 = vand.u32 %v888, 4294901760
    %v973 = vsub.f32 %v888, %v972
    %v974 = vand.u32 %v973, 4294901760
    %v975 = vsub.f32 %v973, %v974
    %v976 = vand.u32 %v975, 4294901760
    %977 = vmatmul.mubr.f32.gmra.mrb[0].mxu0 %v976
    %v978 = vpop.f32.mrb[0].mxu0
    %v979 = vadd.f32 %v873, %v978
    %v980 = vpop.f32.mrb[0].mxu0
    %v981 = vadd.f32 %v873, %v980
    %982 = vmatprep.mubr.f32.mxu0 0.0
    %v983 = vand.u32 %v891, 4294901760
    %v984 = vsub.f32 %v891, %v983
    %v985 = vand.u32 %v984, 4294901760
    %v986 = vsub.f32 %v984, %v985
    %v987 = vand.u32 %v986, 4294901760
    %988 = vmatmul.mubr.f32.gmra.mrb[0].mxu0 %v987
    %v989 = vpop.f32.mrb[0].mxu0
    %v990 = vadd.f32 %v877, %v989
    %v991 = vpop.f32.mrb[0].mxu0
    %v992 = vadd.f32 %v877, %v991
    %993 = vmatprep.mubr.f32.mxu0 0.0
    %v994 = vand.u32 %v894, 4294901760
    %v995 = vsub.f32 %v894, %v994
    %v996 = vand.u32 %v995, 4294901760
    %v997 = vsub.f32 %v995, %v996
    %v998 = vand.u32 %v997, 4294901760
    %999 = vmatmul.mubr.f32.gmra.mrb[0].mxu0 %v998
    %v1000 = vpop.f32.mrb[0].mxu0
    %v1001 = vadd.f32 %v881, %v1000
    %v1002 = vpop.f32.mrb[0].mxu0
    %v1003 = vadd.f32 %v881, %v1002
    %1004 = vmatprep.mubr.f32.mxu0 0.0
    %v1005 = vand.u32 %v897, 4294901760
    %v1006 = vsub.f32 %v897, %v1005
    %v1007 = vand.u32 %v1006, 4294901760
    %v1008 = vsub.f32 %v1006, %v1007
    %v1009 = vand.u32 %v1008, 4294901760
    %1010 = vmatmul.mubr.f32.gmra.mrb[0].mxu0 %v1009
    %v1011 = vpop.f32.mrb[0].mxu0
    %v1012 = vadd.f32 %v885, %v1011
    %v1013 = vpop.f32.mrb[0].mxu0
    %v1014 = vadd.f32 %v885, %v1013
    %1015 = vdwg.mxu0
    %v1016 = vand.u32 %v860, 4294901760
    %v1017 = vsub.f32 %v860, %v1016
    %v1018 = vand.u32 %v1017, 4294901760
    %v1019 = vsub.f32 %v1017, %v1018
    %v1020 = vand.u32 %v1019, 4294901760
    %1021 = vmatprep.subr.mxu0 %v1020
    %v1022 = vand.u32 %v859, 4294901760
    %v1023 = vsub.f32 %v859, %v1022
    %v1024 = vand.u32 %v1023, 4294901760
    %v1025 = vsub.f32 %v1023, %v1024
    %v1026 = vand.u32 %v1025, 4294901760
    %1027 = vmatpush1.msra.mxu0 %v1026
    %v1028 = vand.u32 %v862, 4294901760
    %v1029 = vsub.f32 %v862, %v1028
    %v1030 = vand.u32 %v1029, 4294901760
    %v1031 = vsub.f32 %v1029, %v1030
    %v1032 = vand.u32 %v1031, 4294901760
    %1033 = vmatprep.subr.mxu0 %v1032
    %v1034 = vand.u32 %v861, 4294901760
    %v1035 = vsub.f32 %v861, %v1034
    %v1036 = vand.u32 %v1035, 4294901760
    %v1037 = vsub.f32 %v1035, %v1036
    %v1038 = vand.u32 %v1037, 4294901760
    %1039 = vmatpush1.msra.mxu0 %v1038
    %v1040 = vand.u32 %v864, 4294901760
    %v1041 = vsub.f32 %v864, %v1040
    %v1042 = vand.u32 %v1041, 4294901760
    %v1043 = vsub.f32 %v1041, %v1042
    %v1044 = vand.u32 %v1043, 4294901760
    %1045 = vmatprep.subr.mxu0 %v1044
    %v1046 = vand.u32 %v863, 4294901760
    %v1047 = vsub.f32 %v863, %v1046
    %v1048 = vand.u32 %v1047, 4294901760
    %v1049 = vsub.f32 %v1047, %v1048
    %v1050 = vand.u32 %v1049, 4294901760
    %1051 = vmatpush1.msra.mxu0 %v1050
    %v1052 = vand.u32 %v866, 4294901760
    %v1053 = vsub.f32 %v866, %v1052
    %v1054 = vand.u32 %v1053, 4294901760
    %v1055 = vsub.f32 %v1053, %v1054
    %v1056 = vand.u32 %v1055, 4294901760
    %1057 = vmatprep.subr.mxu0 %v1056
    %v1058 = vand.u32 %v865, 4294901760
    %v1059 = vsub.f32 %v865, %v1058
    %v1060 = vand.u32 %v1059, 4294901760
    %v1061 = vsub.f32 %v1059, %v1060
    %v1062 = vand.u32 %v1061, 4294901760
    %1063 = vmatpush1.msra.mxu0 %v1062
    %1064 = vmatprep.subr.mxu0 0.0
    %1065 = vmatpush1.msra.mxu0 0.0
    %1066 = vmatprep.subr.mxu0 0.0
    %1067 = vmatpush1.msra.mxu0 0.0
    %1068 = vmatprep.subr.mxu0 0.0
    %1069 = vmatpush1.msra.mxu0 0.0
    %1070 = vmatprep.subr.mxu0 0.0
    %1071 = vmatpush1.msra.mxu0 0.0
    %1072 = vmatprep.subr.mxu0 0.0
    %1073 = vmatpush1.msra.mxu0 0.0
    %1074 = vmatprep.subr.mxu0 0.0
    %1075 = vmatpush1.msra.mxu0 0.0
    %1076 = vmatprep.subr.mxu0 0.0
    %1077 = vmatpush1.msra.mxu0 0.0
    %1078 = vmatprep.subr.mxu0 0.0
    %1079 = vmatpush1.msra.mxu0 0.0
    %1080 = vmatprep.subr.mxu0 0.0
    %1081 = vmatpush1.msra.mxu0 0.0
    %1082 = vmatprep.subr.mxu0 0.0
    %1083 = vmatpush1.msra.mxu0 0.0
    %1084 = vmatprep.subr.mxu0 0.0
    %1085 = vmatpush1.msra.mxu0 0.0
    %1086 = vmatprep.subr.mxu0 0.0
    %1087 = vmatpush1.msra.mxu0 0.0
    %1088 = vmatprep.subr.mxu0 0.0
    %1089 = vmatpush1.msra.mxu0 0.0
    %1090 = vmatprep.subr.mxu0 0.0
    %1091 = vmatpush1.msra.mxu0 0.0
    %1092 = vmatprep.subr.mxu0 0.0
    %1093 = vmatpush1.msra.mxu0 0.0
    %1094 = vmatprep.subr.mxu0 0.0
    %1095 = vmatpush1.msra.mxu0 0.0
    %1096 = vmatprep.subr.mxu0 0.0
    %1097 = vmatpush1.msra.mxu0 0.0
    %1098 = vmatprep.subr.mxu0 0.0
    %1099 = vmatpush1.msra.mxu0 0.0
    %1100 = vmatprep.subr.mxu0 0.0
    %1101 = vmatpush1.msra.mxu0 0.0
    %1102 = vmatprep.subr.mxu0 0.0
    %1103 = vmatpush1.msra.mxu0 0.0
    %1104 = vmatprep.subr.mxu0 0.0
    %1105 = vmatpush1.msra.mxu0 0.0
    %1106 = vmatprep.subr.mxu0 0.0
    %1107 = vmatpush1.msra.mxu0 0.0
    %1108 = vmatprep.subr.mxu0 0.0
    %1109 = vmatpush1.msra.mxu0 0.0
    %1110 = vmatprep.subr.mxu0 0.0
    %1111 = vmatpush1.msra.mxu0 0.0
    %1112 = vmatprep.subr.mxu0 0.0
    %1113 = vmatpush1.msra.mxu0 0.0
    %1114 = vmatprep.subr.mxu0 0.0
    %1115 = vmatpush1.msra.mxu0 0.0
    %1116 = vmatprep.subr.mxu0 0.0
    %1117 = vmatpush1.msra.mxu0 0.0
    %1118 = vmatprep.subr.mxu0 0.0
    %1119 = vmatpush1.msra.mxu0 0.0
    %1120 = vmatprep.mubr.f32.mxu0 0.0
    %v1121 = vand.u32 %v888, 4294901760
    %1122 = vmatmul.mubr.f32.gmra.mrb[0].mxu0 %v1121
    %v1123 = vpop.f32.mrb[0].mxu0
    %v1124 = vadd.f32 %v979, %v1123
    %v1125 = vpop.f32.mrb[0].mxu0
    %v1126 = vadd.f32 %v981, %v1125
    %1127 = vmatprep.mubr.f32.mxu0 0.0
    %v1128 = vand.u32 %v891, 4294901760
    %1129 = vmatmul.mubr.f32.gmra.mrb[0].mxu0 %v1128
    %v1130 = vpop.f32.mrb[0].mxu0
    %v1131 = vadd.f32 %v990, %v1130
    %v1132 = vpop.f32.mrb[0].mxu0
    %v1133 = vadd.f32 %v992, %v1132
    %1134 = vmatprep.mubr.f32.mxu0 0.0
    %v1135 = vand.u32 %v894, 4294901760
    %1136 = vmatmul.mubr.f32.gmra.mrb[0].mxu0 %v1135
    %v1137 = vpop.f32.mrb[0].mxu0
    %v1138 = vadd.f32 %v1001, %v1137
    %v1139 = vpop.f32.mrb[0].mxu0
    %v1140 = vadd.f32 %v1003, %v1139
    %1141 = vmatprep.mubr.f32.mxu0 0.0
    %v1142 = vand.u32 %v897, 4294901760
    %1143 = vmatmul.mubr.f32.gmra.mrb[0].mxu0 %v1142
    %v1144 = vpop.f32.mrb[0].mxu0
    %v1145 = vadd.f32 %v1012, %v1144
    %v1146 = vpop.f32.mrb[0].mxu0
    %v1147 = vadd.f32 %v1014, %v1146
    %1148 = vdwg.mxu0
    %v1149 = vand.u32 %v860, 4294901760
    %v1150 = vsub.f32 %v860, %v1149
    %1151 = vmatprep.subr.mxu0 %v1150
    %v1152 = vand.u32 %v859, 4294901760
    %v1153 = vsub.f32 %v859, %v1152
    %1154 = vmatpush1.msra.mxu0 %v1153
    %v1155 = vand.u32 %v862, 4294901760
    %v1156 = vsub.f32 %v862, %v1155
    %1157 = vmatprep.subr.mxu0 %v1156
    %v1158 = vand.u32 %v861, 4294901760
    %v1159 = vsub.f32 %v861, %v1158
    %1160 = vmatpush1.msra.mxu0 %v1159
    %v1161 = vand.u32 %v864, 4294901760
    %v1162 = vsub.f32 %v864, %v1161
    %1163 = vmatprep.subr.mxu0 %v1162
    %v1164 = vand.u32 %v863, 4294901760
    %v1165 = vsub.f32 %v863, %v1164
    %1166 = vmatpush1.msra.mxu0 %v1165
    %v1167 = vand.u32 %v866, 4294901760
    %v1168 = vsub.f32 %v866, %v1167
    %1169 = vmatprep.subr.mxu0 %v1168
    %v1170 = vand.u32 %v865, 4294901760
    %v1171 = vsub.f32 %v865, %v1170
    %1172 = vmatpush1.msra.mxu0 %v1171
    %1173 = vmatprep.subr.mxu0 0.0
    %1174 = vmatpush1.msra.mxu0 0.0
    %1175 = vmatprep.subr.mxu0 0.0
    %1176 = vmatpush1.msra.mxu0 0.0
    %1177 = vmatprep.subr.mxu0 0.0
    %1178 = vmatpush1.msra.mxu0 0.0
    %1179 = vmatprep.subr.mxu0 0.0
    %1180 = vmatpush1.msra.mxu0 0.0
    %1181 = vmatprep.subr.mxu0 0.0
    %1182 = vmatpush1.msra.mxu0 0.0
    %1183 = vmatprep.subr.mxu0 0.0
    %1184 = vmatpush1.msra.mxu0 0.0
    %1185 = vmatprep.subr.mxu0 0.0
    %1186 = vmatpush1.msra.mxu0 0.0
    %1187 = vmatprep.subr.mxu0 0.0
    %1188 = vmatpush1.msra.mxu0 0.0
    %1189 = vmatprep.subr.mxu0 0.0
    %1190 = vmatpush1.msra.mxu0 0.0
    %1191 = vmatprep.subr.mxu0 0.0
    %1192 = vmatpush1.msra.mxu0 0.0
    %1193 = vmatprep.subr.mxu0 0.0
    %1194 = vmatpush1.msra.mxu0 0.0
    %1195 = vmatprep.subr.mxu0 0.0
    %1196 = vmatpush1.msra.mxu0 0.0
    %1197 = vmatprep.subr.mxu0 0.0
    %1198 = vmatpush1.msra.mxu0 0.0
    %1199 = vmatprep.subr.mxu0 0.0
    %1200 = vmatpush1.msra.mxu0 0.0
    %1201 = vmatprep.subr.mxu0 0.0
    %1202 = vmatpush1.msra.mxu0 0.0
    %1203 = vmatprep.subr.mxu0 0.0
    %1204 = vmatpush1.msra.mxu0 0.0
    %1205 = vmatprep.subr.mxu0 0.0
    %1206 = vmatpush1.msra.mxu0 0.0
    %1207 = vmatprep.subr.mxu0 0.0
    %1208 = vmatpush1.msra.mxu0 0.0
    %1209 = vmatprep.subr.mxu0 0.0
    %1210 = vmatpush1.msra.mxu0 0.0
    %1211 = vmatprep.subr.mxu0 0.0
    %1212 = vmatpush1.msra.mxu0 0.0
    %1213 = vmatprep.subr.mxu0 0.0
    %1214 = vmatpush1.msra.mxu0 0.0
    %1215 = vmatprep.subr.mxu0 0.0
    %1216 = vmatpush1.msra.mxu0 0.0
    %1217 = vmatprep.subr.mxu0 0.0
    %1218 = vmatpush1.msra.mxu0 0.0
    %1219 = vmatprep.subr.mxu0 0.0
    %1220 = vmatpush1.msra.mxu0 0.0
    %1221 = vmatprep.subr.mxu0 0.0
    %1222 = vmatpush1.msra.mxu0 0.0
    %1223 = vmatprep.subr.mxu0 0.0
    %1224 = vmatpush1.msra.mxu0 0.0
    %1225 = vmatprep.subr.mxu0 0.0
    %1226 = vmatpush1.msra.mxu0 0.0
    %1227 = vmatprep.subr.mxu0 0.0
    %1228 = vmatpush1.msra.mxu0 0.0
    %1229 = vmatprep.mubr.f32.mxu0 0.0
    %v1230 = vand.u32 %v888, 4294901760
    %v1231 = vsub.f32 %v888, %v1230
    %1232 = vmatmul.mubr.f32.gmra.mrb[0].mxu0 %v1231
    %v1233 = vpop.f32.mrb[0].mxu0
    %v1234 = vadd.f32 %v1124, %v1233
    %v1235 = vpop.f32.mrb[0].mxu0
    %v1236 = vadd.f32 %v1126, %v1235
    %1237 = vmatprep.mubr.f32.mxu0 0.0
    %v1238 = vand.u32 %v891, 4294901760
    %v1239 = vsub.f32 %v891, %v1238
    %1240 = vmatmul.mubr.f32.gmra.mrb[0].mxu0 %v1239
    %v1241 = vpop.f32.mrb[0].mxu0
    %v1242 = vadd.f32 %v1131, %v1241
    %v1243 = vpop.f32.mrb[0].mxu0
    %v1244 = vadd.f32 %v1133, %v1243
    %1245 = vmatprep.mubr.f32.mxu0 0.0
    %v1246 = vand.u32 %v894, 4294901760
    %v1247 = vsub.f32 %v894, %v1246
    %1248 = vmatmul.mubr.f32.gmra.mrb[0].mxu0 %v1247
    %v1249 = vpop.f32.mrb[0].mxu0
    %v1250 = vadd.f32 %v1138, %v1249
    %v1251 = vpop.f32.mrb[0].mxu0
    %v1252 = vadd.f32 %v1140, %v1251
    %1253 = vmatprep.mubr.f32.mxu0 0.0
    %v1254 = vand.u32 %v897, 4294901760
    %v1255 = vsub.f32 %v897, %v1254
    %1256 = vmatmul.mubr.f32.gmra.mrb[0].mxu0 %v1255
    %v1257 = vpop.f32.mrb[0].mxu0
    %v1258 = vadd.f32 %v1145, %v1257
    %v1259 = vpop.f32.mrb[0].mxu0
    %v1260 = vadd.f32 %v1147, %v1259
    %1261 = vdwg.mxu0
    %v1262 = vand.u32 %v860, 4294901760
    %1263 = vmatprep.subr.mxu0 %v1262
    %v1264 = vand.u32 %v859, 4294901760
    %1265 = vmatpush1.msra.mxu0 %v1264
    %v1266 = vand.u32 %v862, 4294901760
    %1267 = vmatprep.subr.mxu0 %v1266
    %v1268 = vand.u32 %v861, 4294901760
    %1269 = vmatpush1.msra.mxu0 %v1268
    %v1270 = vand.u32 %v864, 4294901760
    %1271 = vmatprep.subr.mxu0 %v1270
    %v1272 = vand.u32 %v863, 4294901760
    %1273 = vmatpush1.msra.mxu0 %v1272
    %v1274 = vand.u32 %v866, 4294901760
    %1275 = vmatprep.subr.mxu0 %v1274
    %v1276 = vand.u32 %v865, 4294901760
    %1277 = vmatpush1.msra.mxu0 %v1276
    %1278 = vmatprep.subr.mxu0 0.0
    %1279 = vmatpush1.msra.mxu0 0.0
    %1280 = vmatprep.subr.mxu0 0.0
    %1281 = vmatpush1.msra.mxu0 0.0
    %1282 = vmatprep.subr.mxu0 0.0
    %1283 = vmatpush1.msra.mxu0 0.0
    %1284 = vmatprep.subr.mxu0 0.0
    %1285 = vmatpush1.msra.mxu0 0.0
    %1286 = vmatprep.subr.mxu0 0.0
    %1287 = vmatpush1.msra.mxu0 0.0
    %1288 = vmatprep.subr.mxu0 0.0
    %1289 = vmatpush1.msra.mxu0 0.0
    %1290 = vmatprep.subr.mxu0 0.0
    %1291 = vmatpush1.msra.mxu0 0.0
    %1292 = vmatprep.subr.mxu0 0.0
    %1293 = vmatpush1.msra.mxu0 0.0
    %1294 = vmatprep.subr.mxu0 0.0
    %1295 = vmatpush1.msra.mxu0 0.0
    %1296 = vmatprep.subr.mxu0 0.0
    %1297 = vmatpush1.msra.mxu0 0.0
    %1298 = vmatprep.subr.mxu0 0.0
    %1299 = vmatpush1.msra.mxu0 0.0
    %1300 = vmatprep.subr.mxu0 0.0
    %1301 = vmatpush1.msra.mxu0 0.0
    %1302 = vmatprep.subr.mxu0 0.0
    %1303 = vmatpush1.msra.mxu0 0.0
    %1304 = vmatprep.subr.mxu0 0.0
    %1305 = vmatpush1.msra.mxu0 0.0
    %1306 = vmatprep.subr.mxu0 0.0
    %1307 = vmatpush1.msra.mxu0 0.0
    %1308 = vmatprep.subr.mxu0 0.0
    %1309 = vmatpush1.msra.mxu0 0.0
    %1310 = vmatprep.subr.mxu0 0.0
    %1311 = vmatpush1.msra.mxu0 0.0
    %1312 = vmatprep.subr.mxu0 0.0
    %1313 = vmatpush1.msra.mxu0 0.0
    %1314 = vmatprep.subr.mxu0 0.0
    %1315 = vmatpush1.msra.mxu0 0.0
    %1316 = vmatprep.subr.mxu0 0.0
    %1317 = vmatpush1.msra.mxu0 0.0
    %1318 = vmatprep.subr.mxu0 0.0
    %1319 = vmatpush1.msra.mxu0 0.0
    %1320 = vmatprep.subr.mxu0 0.0
    %1321 = vmatpush1.msra.mxu0 0.0
    %1322 = vmatprep.subr.mxu0 0.0
    %1323 = vmatpush1.msra.mxu0 0.0
    %1324 = vmatprep.subr.mxu0 0.0
    %1325 = vmatpush1.msra.mxu0 0.0
    %1326 = vmatprep.subr.mxu0 0.0
    %1327 = vmatpush1.msra.mxu0 0.0
    %1328 = vmatprep.subr.mxu0 0.0
    %1329 = vmatpush1.msra.mxu0 0.0
    %1330 = vmatprep.subr.mxu0 0.0
    %1331 = vmatpush1.msra.mxu0 0.0
    %1332 = vmatprep.subr.mxu0 0.0
    %1333 = vmatpush1.msra.mxu0 0.0
    %1334 = vmatprep.mubr.f32.mxu0 0.0
    %v1335 = vand.u32 %v888, 4294901760
    %v1336 = vsub.f32 %v888, %v1335
    %v1337 = vand.u32 %v1336, 4294901760
    %1338 = vmatmul.mubr.f32.gmra.mrb[0].mxu0 %v1337
    %v1339 = vpop.f32.mrb[0].mxu0
    %v1340 = vadd.f32 %v1234, %v1339
    %v1341 = vpop.f32.mrb[0].mxu0
    %v1342 = vadd.f32 %v1236, %v1341
    %1343 = vmatprep.mubr.f32.mxu0 0.0
    %v1344 = vand.u32 %v891, 4294901760
    %v1345 = vsub.f32 %v891, %v1344
    %v1346 = vand.u32 %v1345, 4294901760
    %1347 = vmatmul.mubr.f32.gmra.mrb[0].mxu0 %v1346
    %v1348 = vpop.f32.mrb[0].mxu0
    %v1349 = vadd.f32 %v1242, %v1348
    %v1350 = vpop.f32.mrb[0].mxu0
    %v1351 = vadd.f32 %v1244, %v1350
    %1352 = vmatprep.mubr.f32.mxu0 0.0
    %v1353 = vand.u32 %v894, 4294901760
    %v1354 = vsub.f32 %v894, %v1353
    %v1355 = vand.u32 %v1354, 4294901760
    %1356 = vmatmul.mubr.f32.gmra.mrb[0].mxu0 %v1355
    %v1357 = vpop.f32.mrb[0].mxu0
    %v1358 = vadd.f32 %v1250, %v1357
    %v1359 = vpop.f32.mrb[0].mxu0
    %v1360 = vadd.f32 %v1252, %v1359
    %1361 = vmatprep.mubr.f32.mxu0 0.0
    %v1362 = vand.u32 %v897, 4294901760
    %v1363 = vsub.f32 %v897, %v1362
    %v1364 = vand.u32 %v1363, 4294901760
    %1365 = vmatmul.mubr.f32.gmra.mrb[0].mxu0 %v1364
    %v1366 = vpop.f32.mrb[0].mxu0
    %v1367 = vadd.f32 %v1258, %v1366
    %v1368 = vpop.f32.mrb[0].mxu0
    %v1369 = vadd.f32 %v1260, %v1368
    %1370 = vdwg.mxu0
    %v1371 = vand.u32 %v860, 4294901760
    %v1372 = vsub.f32 %v860, %v1371
    %v1373 = vand.u32 %v1372, 4294901760
    %1374 = vmatprep.subr.mxu0 %v1373
    %v1375 = vand.u32 %v859, 4294901760
    %v1376 = vsub.f32 %v859, %v1375
    %v1377 = vand.u32 %v1376, 4294901760
    %1378 = vmatpush1.msra.mxu0 %v1377
    %v1379 = vand.u32 %v862, 4294901760
    %v1380 = vsub.f32 %v862, %v1379
    %v1381 = vand.u32 %v1380, 4294901760
    %1382 = vmatprep.subr.mxu0 %v1381
    %v1383 = vand.u32 %v861, 4294901760
    %v1384 = vsub.f32 %v861, %v1383
    %v1385 = vand.u32 %v1384, 4294901760
    %1386 = vmatpush1.msra.mxu0 %v1385
    %v1387 = vand.u32 %v864, 4294901760
    %v1388 = vsub.f32 %v864, %v1387
    %v1389 = vand.u32 %v1388, 4294901760
    %1390 = vmatprep.subr.mxu0 %v1389
    %v1391 = vand.u32 %v863, 4294901760
    %v1392 = vsub.f32 %v863, %v1391
    %v1393 = vand.u32 %v1392, 4294901760
    %1394 = vmatpush1.msra.mxu0 %v1393
    %v1395 = vand.u32 %v866, 4294901760
    %v1396 = vsub.f32 %v866, %v1395
    %v1397 = vand.u32 %v1396, 4294901760
    %1398 = vmatprep.subr.mxu0 %v1397
    %v1399 = vand.u32 %v865, 4294901760
    %v1400 = vsub.f32 %v865, %v1399
    %v1401 = vand.u32 %v1400, 4294901760
    %1402 = vmatpush1.msra.mxu0 %v1401
    %1403 = vmatprep.subr.mxu0 0.0
    %1404 = vmatpush1.msra.mxu0 0.0
    %1405 = vmatprep.subr.mxu0 0.0
    %1406 = vmatpush1.msra.mxu0 0.0
    %1407 = vmatprep.subr.mxu0 0.0
    %1408 = vmatpush1.msra.mxu0 0.0
    %1409 = vmatprep.subr.mxu0 0.0
    %1410 = vmatpush1.msra.mxu0 0.0
    %1411 = vmatprep.subr.mxu0 0.0
    %1412 = vmatpush1.msra.mxu0 0.0
    %1413 = vmatprep.subr.mxu0 0.0
    %1414 = vmatpush1.msra.mxu0 0.0
    %1415 = vmatprep.subr.mxu0 0.0
    %1416 = vmatpush1.msra.mxu0 0.0
    %1417 = vmatprep.subr.mxu0 0.0
    %1418 = vmatpush1.msra.mxu0 0.0
    %1419 = vmatprep.subr.mxu0 0.0
    %1420 = vmatpush1.msra.mxu0 0.0
    %1421 = vmatprep.subr.mxu0 0.0
    %1422 = vmatpush1.msra.mxu0 0.0
    %1423 = vmatprep.subr.mxu0 0.0
    %1424 = vmatpush1.msra.mxu0 0.0
    %1425 = vmatprep.subr.mxu0 0.0
    %1426 = vmatpush1.msra.mxu0 0.0
    %1427 = vmatprep.subr.mxu0 0.0
    %1428 = vmatpush1.msra.mxu0 0.0
    %1429 = vmatprep.subr.mxu0 0.0
    %1430 = vmatpush1.msra.mxu0 0.0
    %1431 = vmatprep.subr.mxu0 0.0
    %1432 = vmatpush1.msra.mxu0 0.0
    %1433 = vmatprep.subr.mxu0 0.0
    %1434 = vmatpush1.msra.mxu0 0.0
    %1435 = vmatprep.subr.mxu0 0.0
    %1436 = vmatpush1.msra.mxu0 0.0
    %1437 = vmatprep.subr.mxu0 0.0
    %1438 = vmatpush1.msra.mxu0 0.0
    %1439 = vmatprep.subr.mxu0 0.0
    %1440 = vmatpush1.msra.mxu0 0.0
    %1441 = vmatprep.subr.mxu0 0.0
    %1442 = vmatpush1.msra.mxu0 0.0
    %1443 = vmatprep.subr.mxu0 0.0
    %1444 = vmatpush1.msra.mxu0 0.0
    %1445 = vmatprep.subr.mxu0 0.0
    %1446 = vmatpush1.msra.mxu0 0.0
    %1447 = vmatprep.subr.mxu0 0.0
    %1448 = vmatpush1.msra.mxu0 0.0
    %1449 = vmatprep.subr.mxu0 0.0
    %1450 = vmatpush1.msra.mxu0 0.0
    %1451 = vmatprep.subr.mxu0 0.0
    %1452 = vmatpush1.msra.mxu0 0.0
    %1453 = vmatprep.subr.mxu0 0.0
    %1454 = vmatpush1.msra.mxu0 0.0
    %1455 = vmatprep.subr.mxu0 0.0
    %1456 = vmatpush1.msra.mxu0 0.0
    %1457 = vmatprep.subr.mxu0 0.0
    %1458 = vmatpush1.msra.mxu0 0.0
    %1459 = vmatprep.mubr.f32.mxu0 0.0
    %v1460 = vand.u32 %v888, 4294901760
    %1461 = vmatmul.mubr.f32.gmra.mrb[0].mxu0 %v1460
    %v1462 = vpop.f32.mrb[0].mxu0
    %v1463 = vadd.f32 %v1340, %v1462
    %v1464 = vpop.f32.mrb[0].mxu0
    %v1465 = vadd.f32 %v1342, %v1464
    %1466 = vmatprep.mubr.f32.mxu0 0.0
    %v1467 = vand.u32 %v891, 4294901760
    %1468 = vmatmul.mubr.f32.gmra.mrb[0].mxu0 %v1467
    %v1469 = vpop.f32.mrb[0].mxu0
    %v1470 = vadd.f32 %v1349, %v1469
    %v1471 = vpop.f32.mrb[0].mxu0
    %v1472 = vadd.f32 %v1351, %v1471
    %1473 = vmatprep.mubr.f32.mxu0 0.0
    %v1474 = vand.u32 %v894, 4294901760
    %1475 = vmatmul.mubr.f32.gmra.mrb[0].mxu0 %v1474
    %v1476 = vpop.f32.mrb[0].mxu0
    %v1477 = vadd.f32 %v1358, %v1476
    %v1478 = vpop.f32.mrb[0].mxu0
    %v1479 = vadd.f32 %v1360, %v1478
    %1480 = vmatprep.mubr.f32.mxu0 0.0
    %v1481 = vand.u32 %v897, 4294901760
    %1482 = vmatmul.mubr.f32.gmra.mrb[0].mxu0 %v1481
    %v1483 = vpop.f32.mrb[0].mxu0
    %v1484 = vadd.f32 %v1367, %v1483
    %v1485 = vpop.f32.mrb[0].mxu0
    %v1486 = vadd.f32 %v1369, %v1485
    %1487 = vdwg.mxu0
    %v1488 = vand.u32 %v860, 4294901760
    %1489 = vmatprep.subr.mxu0 %v1488
    %v1490 = vand.u32 %v859, 4294901760
    %1491 = vmatpush1.msra.mxu0 %v1490
    %v1492 = vand.u32 %v862, 4294901760
    %1493 = vmatprep.subr.mxu0 %v1492
    %v1494 = vand.u32 %v861, 4294901760
    %1495 = vmatpush1.msra.mxu0 %v1494
    %v1496 = vand.u32 %v864, 4294901760
    %1497 = vmatprep.subr.mxu0 %v1496
    %v1498 = vand.u32 %v863, 4294901760
    %1499 = vmatpush1.msra.mxu0 %v1498
    %v1500 = vand.u32 %v866, 4294901760
    %1501 = vmatprep.subr.mxu0 %v1500
    %v1502 = vand.u32 %v865, 4294901760
    %1503 = vmatpush1.msra.mxu0 %v1502
    %1504 = vmatprep.subr.mxu0 0.0
    %1505 = vmatpush1.msra.mxu0 0.0
    %1506 = vmatprep.subr.mxu0 0.0
    %1507 = vmatpush1.msra.mxu0 0.0
    %1508 = vmatprep.subr.mxu0 0.0
    %1509 = vmatpush1.msra.mxu0 0.0
    %1510 = vmatprep.subr.mxu0 0.0
    %1511 = vmatpush1.msra.mxu0 0.0
    %1512 = vmatprep.subr.mxu0 0.0
    %1513 = vmatpush1.msra.mxu0 0.0
    %1514 = vmatprep.subr.mxu0 0.0
    %1515 = vmatpush1.msra.mxu0 0.0
    %1516 = vmatprep.subr.mxu0 0.0
    %1517 = vmatpush1.msra.mxu0 0.0
    %1518 = vmatprep.subr.mxu0 0.0
    %1519 = vmatpush1.msra.mxu0 0.0
    %1520 = vmatprep.subr.mxu0 0.0
    %1521 = vmatpush1.msra.mxu0 0.0
    %1522 = vmatprep.subr.mxu0 0.0
    %1523 = vmatpush1.msra.mxu0 0.0
    %1524 = vmatprep.subr.mxu0 0.0
    %1525 = vmatpush1.msra.mxu0 0.0
    %1526 = vmatprep.subr.mxu0 0.0
    %1527 = vmatpush1.msra.mxu0 0.0
    %1528 = vmatprep.subr.mxu0 0.0
    %1529 = vmatpush1.msra.mxu0 0.0
    %1530 = vmatprep.subr.mxu0 0.0
    %1531 = vmatpush1.msra.mxu0 0.0
    %1532 = vmatprep.subr.mxu0 0.0
    %1533 = vmatpush1.msra.mxu0 0.0
    %1534 = vmatprep.subr.mxu0 0.0
    %1535 = vmatpush1.msra.mxu0 0.0
    %1536 = vmatprep.subr.mxu0 0.0
    %1537 = vmatpush1.msra.mxu0 0.0
    %1538 = vmatprep.subr.mxu0 0.0
    %1539 = vmatpush1.msra.mxu0 0.0
    %1540 = vmatprep.subr.mxu0 0.0
    %1541 = vmatpush1.msra.mxu0 0.0
    %1542 = vmatprep.subr.mxu0 0.0
    %1543 = vmatpush1.msra.mxu0 0.0
    %1544 = vmatprep.subr.mxu0 0.0
    %1545 = vmatpush1.msra.mxu0 0.0
    %1546 = vmatprep.subr.mxu0 0.0
    %1547 = vmatpush1.msra.mxu0 0.0
    %1548 = vmatprep.subr.mxu0 0.0
    %1549 = vmatpush1.msra.mxu0 0.0
    %1550 = vmatprep.subr.mxu0 0.0
    %1551 = vmatpush1.msra.mxu0 0.0
    %1552 = vmatprep.subr.mxu0 0.0
    %1553 = vmatpush1.msra.mxu0 0.0
    %1554 = vmatprep.subr.mxu0 0.0
    %1555 = vmatpush1.msra.mxu0 0.0
    %1556 = vmatprep.subr.mxu0 0.0
    %1557 = vmatpush1.msra.mxu0 0.0
    %1558 = vmatprep.subr.mxu0 0.0
    %1559 = vmatpush1.msra.mxu0 0.0
    %1560 = vmatprep.mubr.f32.mxu0 0.0
    %v1561 = vand.u32 %v888, 4294901760
    %1562 = vmatmul.mubr.f32.gmra.mrb[0].mxu0 %v1561
    %v1563 = vpop.f32.mrb[0].mxu0
    %v1564 = vadd.f32 %v1463, %v1563
    %v1565 = vpop.f32.mrb[0].mxu0
    %v1566 = vadd.f32 %v1465, %v1565
    %1567 = vmatprep.mubr.f32.mxu0 0.0
    %v1568 = vand.u32 %v891, 4294901760
    %1569 = vmatmul.mubr.f32.gmra.mrb[0].mxu0 %v1568
    %v1570 = vpop.f32.mrb[0].mxu0
    %v1571 = vadd.f32 %v1470, %v1570
    %v1572 = vpop.f32.mrb[0].mxu0
    %v1573 = vadd.f32 %v1472, %v1572
    %1574 = vmatprep.mubr.f32.mxu0 0.0
    %v1575 = vand.u32 %v894, 4294901760
    %1576 = vmatmul.mubr.f32.gmra.mrb[0].mxu0 %v1575
    %v1577 = vpop.f32.mrb[0].mxu0
    %v1578 = vadd.f32 %v1477, %v1577
    %v1579 = vpop.f32.mrb[0].mxu0
    %v1580 = vadd.f32 %v1479, %v1579
    %1581 = vmatprep.mubr.f32.mxu0 0.0
    %v1582 = vand.u32 %v897, 4294901760
    %1583 = vmatmul.mubr.f32.gmra.mrb[0].mxu0 %v1582
    %v1584 = vpop.f32.mrb[0].mxu0
    %v1585 = vadd.f32 %v1484, %v1584
    %v1586 = vpop.f32.mrb[0].mxu0
    %v1587 = vadd.f32 %v1486, %v1586
    %1588 = vdwg.mxu0
    %v1589 = vmax.f32 %v1564, 0.0
    %v1590 = vmax.f32 %v1566, 0.0
    %v1591 = vmax.f32 %v1571, 0.0
    %v1592 = vmax.f32 %v1573, 0.0
    %v1593 = vmax.f32 %v1578, 0.0
    %v1594 = vmax.f32 %v1580, 0.0
    %v1595 = vmax.f32 %v1585, 0.0
    %v1596 = vmax.f32 %v1587, 0.0
    %1597 = vset.pattern.permute.xlu0 2
    %1598 = vperm.xlu0 %1597, %v18
    %v1599 = vpop.permute.xlu0 %1598
    %1601 = vset.pattern.permute.xlu0 2
    %1602 = vperm.xlu0 %1601, %v19
    %v1603 = vpop.permute.xlu0 %1602
    %1605 = vset.pattern.permute.xlu0 2
    %1606 = vperm.xlu0 %1605, %v20
    %v1607 = vpop.permute.xlu0 %1606
    %1609 = vset.pattern.permute.xlu0 2
    %1610 = vperm.xlu0 %1609, %v21
    %v1611 = vpop.permute.xlu0 %1610
    %v1613 = vmul.f32 %v1589, %v1599
    %v1614 = vmul.f32 %v1590, %v1599
    %v1615 = vmul.f32 %v1591, %v1603
    %v1616 = vmul.f32 %v1592, %v1603
    %v1617 = vmul.f32 %v1593, %v1607
    %v1618 = vmul.f32 %v1594, %v1607
    %v1619 = vmul.f32 %v1595, %v1611
    %v1620 = vmul.f32 %v1596, %v1611
    %v1621 = vadd.f32 %v1613, %v1615
    %v1622 = vadd.f32 %v1621, %v1617
    %v1623 = vadd.f32 %v1622, %v1619
    %v1624 = vrot.slane %v1623, 4
    %v1625 = vadd.f32 %v1623, %v1624
    %v1626 = vrot.slane %v1625, 2
    %v1627 = vadd.f32 %v1625, %v1626
    %v1628 = vrot.slane %v1627, 1
    %v1629 = vadd.f32 %v1627, %v1628
    %v1630 = vadd.f32 %v1614, %v1616
    %v1631 = vadd.f32 %v1630, %v1618
    %v1632 = vadd.f32 %v1631, %v1620
    %v1633 = vrot.slane %v1632, 4
    %v1634 = vadd.f32 %v1632, %v1633
    %v1635 = vrot.slane %v1634, 2
    %v1636 = vadd.f32 %v1634, %v1635
    %v1637 = vrot.slane %v1636, 1
    %v1638 = vadd.f32 %v1636, %v1637
    %1639 = vset.pattern.permute.xlu0 6
    %1640 = vperm.xlu0 %1639, %v18
    %v1641 = vpop.permute.xlu0 %1640
    %v1643 = vadd.f32 %v1629, %v1641
    %v1644 = vadd.f32 %v1638, %v1641
    %v1647 = vcombine.low %v1643, %v1644
    %v1649 = vunpack.c.l.s4 1966171168
    %v1650 = vunpack.c.0.s8 %v1649
    %v1651 = vlaneseq
    %v1652 = vshrl.u32 %v1651, 7
    %v1653 = vsub.s32 %v1650, %v1652
    %v1654 = vrot.slane %v1647, %v1653
    %v1656 = vunpack.c.l.s4 1966171168
    %v1657 = vunpack.c.0.s8 %v1656
    %v1658 = vlaneseq
    %v1659 = vshrl.u32 %v1658, 7
    %v1660 = vsub.s32 %v1657, %v1659
    %v1661 = vrot.slane %v1654, %v1660
    %v1663 = vlaneseq
    %vm1664 = vcmp.ge.s32.totalorder %v1663, 0
    %vm1665 = vcmp.lt.s32.totalorder %v1663, 256
    %vm1666 = vmand %vm1664, %vm1665
    %1667 = vst.msk [vmem:[#allocation2] sm:$0x3] %vm1666, %v1661
    // Predicated region
    $region14: #{tpu_custom_call.1} parent=1 // pred_check
      _
    $region15: #{tpu_custom_call.1} parent=1 // pred_check_branch
      %1669 = sbr.rel (0) target = $region17
    $region16: #{tpu_custom_call.1} parent=1 // pred_region
      %s1671 = ssub.s32 32, 32
      %1672 = vsyncadd [#allocation3], %s1671
      %s1674 = sshll.u32 [#allocation2], 4
      %s1675 = int_to_ptr.vmem [resolvable:$true] %s1674
      %1677 = dma.vmem_to_hbm [thread:$0]  %s1675, 32, %s3, [#allocation3]
    $region17: #{tpu_custom_call.1} parent=1 // pred_fallthru
      _
    // Predicated region
    $region18: #{tpu_custom_call.1} parent=1 // pred_check
      _
    $region19: #{tpu_custom_call.1} parent=1 // pred_check_branch
      %1679 = sbr.rel (0) target = $region21
    $region20: #{tpu_custom_call.1} parent=1 // pred_region
      %1680 = dma.done [#allocation3], 32
    $region21: #{tpu_custom_call.1} parent=1 // pred_fallthru
      _
    %1681 = vsyncpa [#allocation3], 1

</llo_original>
